<compile_context>
chip_gen: v7x
topology: tpu7x:2x2x1
jax: 0.10.0
libtpu: 0.0.40
codegen_flags: <defaults>
</compile_context>

<pallas_src>
import functools

import jax
import jax.numpy as jnp
from jax.experimental import pallas as pl
from jax.experimental.pallas import tpu as pltpu


def _round_up(x, m):
    return ((x + m - 1) // m) * m


def jointnet_kernel(enc_ref, dec_ref, w1e_ref, w1d_ref, b1_ref, w2_ref, b2_ref,
                    out_ref, h_ref, *, t_chunk, epi_dtype):
    """Grid = (B, T-tiles, U-tiles, V-tiles); V innermost.

    enc_ref: (1, Tt, He) bf16   dec_ref: (1, Ut, Hd) bf16
    w1e_ref: (He, D) bf16       w1d_ref: (Hd, D) bf16     b1_ref: (1, D) f32
    w2_ref:  (D, Vt) bf16       b2_ref:  (1, Vt) f32
    out_ref: (1, Tt, Ut, Vt)    h_ref (VMEM scratch): (Tt*Ut, D) bf16
    """
    _, Tt, Ut, Vt = out_ref.shape
    D = h_ref.shape[-1]

    # h depends only on (b, ti, ui): compute it once when the vocab index is 0
    # and reuse the bf16 scratch for every vocab tile of this (b, ti, ui).
    @pl.when(pl.program_id(3) == 0)
    def _():
        # First-layer partial products on the MXU, f32 accumulation.
        pe = jnp.dot(enc_ref[0], w1e_ref[...],
                     preferred_element_type=jnp.float32)                 # (Tt, D)
        pd = jnp.dot(dec_ref[0], w1d_ref[...],
                     preferred_element_type=jnp.float32) + b1_ref[...]   # (Ut, D)
        pe = pe.astype(epi_dtype)
        pd = pd.astype(epi_dtype)

        # Chunk the broadcast-add + tanh over Tt so the peak temporary is only
        # (t_chunk, Ut, D); the loop is fully unrolled (<= 8 static chunks)
        # with static slice offsets.
        for c in range(Tt // t_chunk):
            pe_c = pe[c * t_chunk:(c + 1) * t_chunk]                     # (t_chunk, D)
            h_c = jnp.tanh(pe_c[:, None, :] + pd[None, :, :])            # (t_chunk, Ut, D)
            h_ref[c * t_chunk * Ut:(c + 1) * t_chunk * Ut, :] = (
                h_c.reshape(t_chunk * Ut, D).astype(h_ref.dtype))

    # Dominant projection for this vocab tile: bf16 x bf16 -> f32 acc (MXU).
    logits = jnp.dot(h_ref[...], w2_ref[...],
                     preferred_element_type=jnp.float32) + b2_ref[...]   # (Tt*Ut, Vt)
    out_ref[0] = logits.reshape(Tt, Ut, Vt).astype(out_ref.dtype)


def _tpu_generation():
    try:
        kind = jax.devices()[0].device_kind.lower()
    except Exception:
        return "unknown"
    if "v6" in kind:
        return "v6e"
    if "v5" in kind:
        return "v5e"
    if "v7" in kind or "7x" in kind:
        return "v7x"
    return "unknown"


def _choose_config(B, T, U, V, gen):
    """Per-generation tile caps, epilogue dtype, VMEM budget, D alignment."""
    if gen == "v5e":      # 128 MiB VMEM, MXU-bound, no bf16 VPU/EUP -> f32 tanh
        caps, epi, budget, d_align = (128, 64, 512), jnp.float32, 100 << 20, 128
    elif gen == "v6e":    # 128 MiB VMEM, bf16 VPU/EUP
        caps, epi, budget, d_align = (128, 32, 1024), jnp.bfloat16, 100 << 20, 256
    elif gen == "v7x":    # 64 MiB VMEM, 2 TCs/chip, bf16 VPU/EUP
        caps, epi, budget, d_align = (128, 32, 512), jnp.bfloat16, 52 << 20, 256
    else:                 # unknown generation -> conservative defaults
        caps, epi, budget, d_align = (64, 32, 512), jnp.float32, 48 << 20, 128

    Tt = min(_round_up(T, 16), caps[0])
    Ut = min(_round_up(U, 16), caps[1])
    Vt = min(_round_up(V, 128), caps[2])

    if gen == "v7x":
        # Keep at least 2 parallel grid steps so both TensorCores get work.
        while B * pl.cdiv(T, Tt) * pl.cdiv(U, Ut) < 2 and Tt > 16:
            Tt //= 2
        while B * pl.cdiv(T, Tt) * pl.cdiv(U, Ut) < 2 and Ut > 16:
            Ut //= 2

    return Tt, Ut, Vt, epi, budget, d_align


def jointnet_forward(enc_state, dec_state, params, out_dtype=jnp.bfloat16):
    """enc_state: (B, T, He), dec_state: (B, U, Hd) -> (B, T, U, V) logits."""
    B, T, He = enc_state.shape
    Bd, U, Hd = dec_state.shape
    assert B == Bd
    w1e, w1d, b1, w2, b2 = params
    D = w1e.shape[1]
    V = w2.shape[1]

    gen = _tpu_generation()
    Tt, Ut, Vt, epi_dtype, vmem_budget, d_align = _choose_config(B, T, U, V, gen)
    t_chunk = min(16, Tt)

    Tp, Up, Vp = _round_up(T, Tt), _round_up(U, Ut), _round_up(V, Vt)
    # Pad D (inner_dim) to an MXU-friendly multiple when large enough to
    # matter; zero-padded D columns/rows are exact (tanh(0) contributes 0
    # through zero W2 rows).
    Dp = _round_up(D, d_align) if D >= d_align else D

    # Pad to tile multiples and cast matmul operands to bf16 (accumulation
    # stays f32 in-kernel).  D/V padding is exact; padded T/U rows are sliced
    # away below.
    enc_p = jnp.pad(enc_state, ((0, 0), (0, Tp - T), (0, 0))).astype(jnp.bfloat16)
    dec_p = jnp.pad(dec_state, ((0, 0), (0, Up - U), (0, 0))).astype(jnp.bfloat16)
    w1e_b = jnp.pad(w1e, ((0, 0), (0, Dp - D))).astype(jnp.bfloat16)
    w1d_b = jnp.pad(w1d, ((0, 0), (0, Dp - D))).astype(jnp.bfloat16)
    b1_p = jnp.pad(b1, ((0, 0), (0, Dp - D))).astype(jnp.float32)
    w2_b = jnp.pad(w2, ((0, Dp - D), (0, Vp - V))).astype(jnp.bfloat16)
    b2_p = jnp.pad(b2, ((0, 0), (0, Vp - V))).astype(jnp.float32)

    nT, nU, nV = Tp // Tt, Up // Ut, Vp // Vt
    grid = (B, nT, nU, nV)
    out_isz = jnp.dtype(out_dtype).itemsize
    epi_isz = jnp.dtype(epi_dtype).itemsize

    kernel = functools.partial(jointnet_kernel, t_chunk=t_chunk,
                               epi_dtype=epi_dtype)

    def est_vmem(w1_bufs):
        # Honest resident-VMEM estimate (includes the f32 logits temporary and
        # the chunked tanh temporaries the previous version omitted).
        return (2 * Tt * He * 2 + 2 * Ut * Hd * 2          # enc/dec tiles (bf16, DB)
                + w1_bufs * (He + Hd) * Dp * 2             # W1e / W1d (bf16)
                + w1_bufs * Dp * 4                         # b1 (f32)
                + 2 * Dp * Vt * 2 + 2 * Vt * 4             # W2 tile (bf16, DB), b2
                + 2 * Tt * Ut * Vt * out_isz               # output tile (DB)
                + Tt * Ut * Dp * 2                         # h scratch (bf16)
                + (Tt + Ut) * Dp * (4 + epi_isz)           # pe/pd f32 + epilogue copy
                + t_chunk * Ut * Dp * epi_isz              # chunked tanh temp
                + Tt * Ut * Vt * 4)                        # f32 logits temp

    # W2/b2 are re-fetched for every (b, ti, ui); count that honestly so XLA's
    # scheduler sees the real HBM traffic.
    cost = pl.CostEstimate(
        flops=int(2 * B * nU * Tp * He * Dp + 2 * B * nT * Up * Hd * Dp
                  + 2 * B * Tp * Up * Dp * Vp),
        transcendentals=int(B * Tp * Up * Dp),
        bytes_accessed=int(B * Tp * He * 2
                           + B * nT * Up * Hd * 2
                           + (He + Hd) * Dp * 2 + Dp * 4
                           + B * nT * nU * (Dp * Vp * 2 + Vp * 4)
                           + B * Tp * Up * Vp * out_isz),
    )

    def build(single_buffer_invariants):
        w1_bufs = 1 if single_buffer_invariants else 2
        vmem_limit = int(min(max(est_vmem(w1_bufs) + (8 << 20), 32 << 20),
                             vmem_budget))

        def const2d(shape):
            # Loop-invariant operands: DMA'd once; single-buffer to save VMEM.
            if single_buffer_invariants:
                return pl.BlockSpec(shape, lambda b, ti, ui, vi: (0, 0),
                                    pipeline_mode=pl.Buffered(1))
            return pl.BlockSpec(shape, lambda b, ti, ui, vi: (0, 0))

        return pl.pallas_call(
            kernel,
            out_shape=jax.ShapeDtypeStruct((B, Tp, Up, Vp), out_dtype),
            grid_spec=pltpu.PrefetchScalarGridSpec(
                num_scalar_prefetch=0,
                grid=grid,
                in_specs=[
                    pl.BlockSpec((1, Tt, He), lambda b, ti, ui, vi: (b, ti, 0)),
                    pl.BlockSpec((1, Ut, Hd), lambda b, ti, ui, vi: (b, ui, 0)),
                    const2d((He, Dp)),
                    const2d((Hd, Dp)),
                    const2d((1, Dp)),
                    pl.BlockSpec((Dp, Vt), lambda b, ti, ui, vi: (0, vi)),
                    pl.BlockSpec((1, Vt), lambda b, ti, ui, vi: (0, vi)),
                ],
                out_specs=pl.BlockSpec((1, Tt, Ut, Vt),
                                       lambda b, ti, ui, vi: (b, ti, ui, vi)),
                scratch_shapes=[pltpu.VMEM((Tt * Ut, Dp), jnp.bfloat16)],
            ),
            compiler_params=pltpu.CompilerParams(
                dimension_semantics=("parallel", "parallel", "parallel",
                                     "arbitrary"),
                vmem_limit_bytes=vmem_limit),
            cost_estimate=cost,
        )

    args = (enc_p, dec_p, w1e_b, w1d_b, b1_p, w2_b, b2_p)
    try:
        out_p = build(True)(*args)    # single-buffered loop-invariant W1/b1
    except Exception:
        out_p = build(False)(*args)   # fallback: default double-buffering

    # Only pay the slice copy when padding was actually applied.
    if (Tp, Up, Vp) == (T, U, V):
        return out_p
    return out_p[:, :T, :U, :V]


def jointnet_reference(enc_state, dec_state, params):
    """Pure-JAX f32 reference mirroring the PyTorch forward exactly."""
    w1e, w1d, b1, w2, b2 = params
    w1 = jnp.concatenate([w1e, w1d], axis=0)          # (He+Hd, D)
    B, T, He = enc_state.shape
    _, U, Hd = dec_state.shape
    enc = jnp.broadcast_to(enc_state[:, :, None, :], (B, T, U, He))
    dec = jnp.broadcast_to(dec_state[:, None, :, :], (B, T, U, Hd))
    concat = jnp.concatenate([enc, dec], axis=-1)     # (B, T, U, He+Hd)
    h = jnp.tanh(concat @ w1 + b1[0])
    return h @ w2 + b2[0]


def init_params(key, input_size, inner_dim, vocab_size, h_enc):
    k1, k2, k3, k4 = jax.random.split(key, 4)
    # PyTorch nn.Linear stores weight as (out, in); we keep (in, out) so the
    # kernel computes x @ W, and split forward_layer weight into enc/dec halves.
    w1 = jax.random.normal(k1, (input_size, inner_dim), jnp.float32) * 0.1
    b1 = jax.random.normal(k2, (1, inner_dim), jnp.float32) * 0.1
    w2 = jax.random.normal(k3, (inner_dim, vocab_size), jnp.float32) * 0.1
    b2 = jax.random.normal(k4, (1, vocab_size), jnp.float32) * 0.1
    w1e = w1[:h_enc]
    w1d = w1[h_enc:]
    return (w1e, w1d, b1, w2, b2)


if __name__ == "__main__":
    # Small shapes: batch=2, T=8, U=8, H_enc=H_dec=16 -> input_size=32,
    # inner_dim=32, vocab_size=16.
    B, T, U = 2, 8, 8
    H_ENC, H_DEC = 16, 16
    INPUT_SIZE = H_ENC + H_DEC
    INNER_DIM = 32
    VOCAB = 16

    key = jax.random.PRNGKey(0)
    k_enc, k_dec, k_par = jax.random.split(key, 3)
    enc_state = jax.random.normal(k_enc, (B, T, H_ENC), jnp.float32)
    dec_state = jax.random.normal(k_dec, (B, U, H_DEC), jnp.float32)
    params = init_params(k_par, INPUT_SIZE, INNER_DIM, VOCAB, H_ENC)

    out = jointnet_forward(enc_state, dec_state, params)   # bf16 logits
    out = jax.block_until_ready(out)

    ref = jointnet_reference(enc_state, dec_state, params)
    assert out.shape == (B, T, U, VOCAB), out.shape
    # bf16 matmul operands / bf16 logits -> loosened tolerance vs f32 reference.
    assert jnp.allclose(out.astype(jnp.float32), ref, atol=5e-2, rtol=5e-2), \
        "mismatch vs reference"

    print("KERNEL_OK")
</pallas_src>

<mosaic_0001>
module attributes {stable_mosaic.version = 11 : i64} {
  func.func @jointnet_kernel(%arg0: i32, %arg1: i32, %arg2: i32, %arg3: i32, %arg4: memref<1x16x16xbf16, #tpu.memory_space<vmem>>, %arg5: memref<1x16x16xbf16, #tpu.memory_space<vmem>>, %arg6: memref<16x32xbf16, #tpu.memory_space<vmem>>, %arg7: memref<16x32xbf16, #tpu.memory_space<vmem>>, %arg8: memref<1x32xf32, #tpu.memory_space<vmem>>, %arg9: memref<32x128xbf16, #tpu.memory_space<vmem>>, %arg10: memref<1x128xf32, #tpu.memory_space<vmem>>, %arg11: memref<1x16x16x128xbf16, #tpu.memory_space<vmem>>, %arg12: memref<256x32xbf16, #tpu.memory_space<vmem>>) attributes {dimension_semantics = [#tpu.dimension_semantics<parallel>, #tpu.dimension_semantics<parallel>, #tpu.dimension_semantics<parallel>, #tpu.dimension_semantics<arbitrary>], iteration_bounds = array<i64: 2, 1, 1, 1>, scalar_prefetch = 0 : i64, scratch_operands = 1 : i64, tpu.core_type = #tpu.core_type<tc>, window_params = [{transform_indices = @transform_0, window_bounds = array<i64: 1, 16, 16>}, {transform_indices = @transform_1, window_bounds = array<i64: 1, 16, 16>}, {pipeline_mode = #tpu.pipeline_mode<synchronous>, transform_indices = @transform_2, window_bounds = array<i64: 16, 32>}, {pipeline_mode = #tpu.pipeline_mode<synchronous>, transform_indices = @transform_3, window_bounds = array<i64: 16, 32>}, {pipeline_mode = #tpu.pipeline_mode<synchronous>, transform_indices = @transform_4, window_bounds = array<i64: 1, 32>}, {transform_indices = @transform_5, window_bounds = array<i64: 32, 128>}, {transform_indices = @transform_6, window_bounds = array<i64: 1, 128>}, {transform_indices = @transform_7, window_bounds = array<i64: 1, 16, 16, 128>}]} {
    %c0_i32 = arith.constant 0 : i32
    %0 = arith.cmpi eq, %arg3, %c0_i32 : i32
    %1 = arith.extui %0 : i1 to i32
    %c0_i32_0 = arith.constant 0 : i32
    %2 = arith.cmpi ne, %1, %c0_i32_0 : i32
    scf.if %2 {
      %c0_10 = arith.constant 0 : index
      %c0_11 = arith.constant 0 : index
      %c0_12 = arith.constant 0 : index
      %14 = vector.load %arg4[%c0_10, %c0_11, %c0_12] : memref<1x16x16xbf16, #tpu.memory_space<vmem>>, vector<1x16x16xbf16>
      %15 = vector.shape_cast %14 : vector<1x16x16xbf16> to vector<16x16xbf16>
      %c0_13 = arith.constant 0 : index
      %c0_14 = arith.constant 0 : index
      %16 = vector.load %arg6[%c0_13, %c0_14] : memref<16x32xbf16, #tpu.memory_space<vmem>>, vector<16x32xbf16>
      %cst_15 = arith.constant dense<0.000000e+00> : vector<16x32xf32>
      %17 = tpu.matmul %15, %16, %cst_15 {dimension_numbers = #tpu.dot_dimension_numbers<[1], [0], [0], [1], [0, 0, 1, 1], [], []>} : vector<16x16xbf16>, vector<16x32xbf16>, vector<16x32xf32> -> vector<16x32xf32>
      %c0_16 = arith.constant 0 : index
      %c0_17 = arith.constant 0 : index
      %c0_18 = arith.constant 0 : index
      %18 = vector.load %arg5[%c0_16, %c0_17, %c0_18] : memref<1x16x16xbf16, #tpu.memory_space<vmem>>, vector<1x16x16xbf16>
      %19 = vector.shape_cast %18 : vector<1x16x16xbf16> to vector<16x16xbf16>
      %c0_19 = arith.constant 0 : index
      %c0_20 = arith.constant 0 : index
      %20 = vector.load %arg7[%c0_19, %c0_20] : memref<16x32xbf16, #tpu.memory_space<vmem>>, vector<16x32xbf16>
      %cst_21 = arith.constant dense<0.000000e+00> : vector<16x32xf32>
      %21 = tpu.matmul %19, %20, %cst_21 {dimension_numbers = #tpu.dot_dimension_numbers<[1], [0], [0], [1], [0, 0, 1, 1], [], []>} : vector<16x16xbf16>, vector<16x32xbf16>, vector<16x32xf32> -> vector<16x32xf32>
      %c0_22 = arith.constant 0 : index
      %c0_23 = arith.constant 0 : index
      %22 = vector.load %arg8[%c0_22, %c0_23] : memref<1x32xf32, #tpu.memory_space<vmem>>, vector<1x32xf32>
      %23 = vector.broadcast %22 : vector<1x32xf32> to vector<16x32xf32>
      %24 = arith.addf %21, %23 : vector<16x32xf32>
      %25 = vector.shape_cast %17 : vector<16x32xf32> to vector<16x1x32xf32>
      %26 = vector.shape_cast %24 : vector<16x32xf32> to vector<1x16x32xf32>
      %27 = vector.broadcast %25 : vector<16x1x32xf32> to vector<16x16x32xf32>
      %28 = vector.broadcast %26 : vector<1x16x32xf32> to vector<16x16x32xf32>
      %29 = arith.addf %27, %28 : vector<16x16x32xf32>
      %30 = math.tanh %29 : vector<16x16x32xf32>
      %31 = vector.shape_cast %30 : vector<16x16x32xf32> to vector<256x32xf32>
      %32 = arith.truncf %31 : vector<256x32xf32> to vector<256x32xbf16>
      %c0_24 = arith.constant 0 : index
      %c0_25 = arith.constant 0 : index
      %33 = vector.load %arg12[%c0_24, %c0_25] : memref<256x32xbf16, #tpu.memory_space<vmem>>, vector<256x32xbf16>
      tpu.vector_store %arg12[%c0_24, %c0_25], %32 {strides = array<i32>} : memref<256x32xbf16, #tpu.memory_space<vmem>>, vector<256x32xbf16>,
    } else {
    }
    %c0 = arith.constant 0 : index
    %c0_1 = arith.constant 0 : index
    %3 = vector.load %arg12[%c0, %c0_1] : memref<256x32xbf16, #tpu.memory_space<vmem>>, vector<256x32xbf16>
    %c0_2 = arith.constant 0 : index
    %c0_3 = arith.constant 0 : index
    %4 = vector.load %arg9[%c0_2, %c0_3] : memref<32x128xbf16, #tpu.memory_space<vmem>>, vector<32x128xbf16>
    %cst = arith.constant dense<0.000000e+00> : vector<256x128xf32>
    %5 = tpu.matmul %3, %4, %cst {dimension_numbers = #tpu.dot_dimension_numbers<[1], [0], [0], [1], [0, 0, 1, 1], [], []>} : vector<256x32xbf16>, vector<32x128xbf16>, vector<256x128xf32> -> vector<256x128xf32>
    %c0_4 = arith.constant 0 : index
    %c0_5 = arith.constant 0 : index
    %6 = vector.load %arg10[%c0_4, %c0_5] : memref<1x128xf32, #tpu.memory_space<vmem>>, vector<1x128xf32>
    %7 = vector.broadcast %6 : vector<1x128xf32> to vector<256x128xf32>
    %8 = arith.addf %5, %7 : vector<256x128xf32>
    %9 = vector.shape_cast %8 : vector<256x128xf32> to vector<16x16x128xf32>
    %10 = arith.truncf %9 : vector<16x16x128xf32> to vector<16x16x128xbf16>
    %c0_6 = arith.constant 0 : index
    %c0_7 = arith.constant 0 : index
    %c0_8 = arith.constant 0 : index
    %c0_9 = arith.constant 0 : index
    %11 = vector.load %arg11[%c0_6, %c0_7, %c0_8, %c0_9] : memref<1x16x16x128xbf16, #tpu.memory_space<vmem>>, vector<1x16x16x128xbf16>
    %12 = vector.shape_cast %11 : vector<1x16x16x128xbf16> to vector<16x16x128xbf16>
    %13 = vector.shape_cast %10 : vector<16x16x128xbf16> to vector<1x16x16x128xbf16>
    tpu.vector_store %arg11[%c0_6, %c0_7, %c0_8, %c0_9], %13 {strides = array<i32>} : memref<1x16x16x128xbf16, #tpu.memory_space<vmem>>, vector<1x16x16x128xbf16>,
    return
  }
  func.func @transform_0(%arg0: i32, %arg1: i32, %arg2: i32, %arg3: i32) -> (i32, i32, i32) {
    %c0_i32 = arith.constant 0 : i32
    %c0_i32_0 = arith.constant 0 : i32
    return %arg0, %arg1, %c0_i32 : i32, i32, i32
  }
  func.func @transform_1(%arg0: i32, %arg1: i32, %arg2: i32, %arg3: i32) -> (i32, i32, i32) {
    %c0_i32 = arith.constant 0 : i32
    %c0_i32_0 = arith.constant 0 : i32
    return %arg0, %arg2, %c0_i32 : i32, i32, i32
  }
  func.func @transform_2(%arg0: i32, %arg1: i32, %arg2: i32, %arg3: i32) -> (i32, i32) {
    %c0_i32 = arith.constant 0 : i32
    %c0_i32_0 = arith.constant 0 : i32
    %c0_i32_1 = arith.constant 0 : i32
    return %c0_i32, %c0_i32_0 : i32, i32
  }
  func.func @transform_3(%arg0: i32, %arg1: i32, %arg2: i32, %arg3: i32) -> (i32, i32) {
    %c0_i32 = arith.constant 0 : i32
    %c0_i32_0 = arith.constant 0 : i32
    %c0_i32_1 = arith.constant 0 : i32
    return %c0_i32, %c0_i32_0 : i32, i32
  }
  func.func @transform_4(%arg0: i32, %arg1: i32, %arg2: i32, %arg3: i32) -> (i32, i32) {
    %c0_i32 = arith.constant 0 : i32
    %c0_i32_0 = arith.constant 0 : i32
    %c0_i32_1 = arith.constant 0 : i32
    return %c0_i32, %c0_i32_0 : i32, i32
  }
  func.func @transform_5(%arg0: i32, %arg1: i32, %arg2: i32, %arg3: i32) -> (i32, i32) {
    %c0_i32 = arith.constant 0 : i32
    %c0_i32_0 = arith.constant 0 : i32
    return %c0_i32, %arg3 : i32, i32
  }
  func.func @transform_6(%arg0: i32, %arg1: i32, %arg2: i32, %arg3: i32) -> (i32, i32) {
    %c0_i32 = arith.constant 0 : i32
    %c0_i32_0 = arith.constant 0 : i32
    return %c0_i32, %arg3 : i32, i32
  }
  func.func @transform_7(%arg0: i32, %arg1: i32, %arg2: i32, %arg3: i32) -> (i32, i32, i32, i32) {
    %c0_i32 = arith.constant 0 : i32
    return %arg0, %arg1, %arg2, %arg3 : i32, i32, i32, i32
  }
}

module attributes {stable_mosaic.version = 11 : i64} {
  func.func @jointnet_kernel(%arg0: i32, %arg1: i32, %arg2: i32, %arg3: i32, %arg4: memref<1x16x16xbf16, #tpu.memory_space<vmem>>, %arg5: memref<1x16x16xbf16, #tpu.memory_space<vmem>>, %arg6: memref<16x32xbf16, #tpu.memory_space<vmem>>, %arg7: memref<16x32xbf16, #tpu.memory_space<vmem>>, %arg8: memref<1x32xf32, #tpu.memory_space<vmem>>, %arg9: memref<32x128xbf16, #tpu.memory_space<vmem>>, %arg10: memref<1x128xf32, #tpu.memory_space<vmem>>, %arg11: memref<1x16x16x128xbf16, #tpu.memory_space<vmem>>, %arg12: memref<256x32xbf16, #tpu.memory_space<vmem>>) attributes {dimension_semantics = [#tpu.dimension_semantics<parallel>, #tpu.dimension_semantics<parallel>, #tpu.dimension_semantics<parallel>, #tpu.dimension_semantics<arbitrary>], iteration_bounds = array<i64: 2, 1, 1, 1>, scalar_prefetch = 0 : i64, scratch_operands = 1 : i64, tpu.core_type = #tpu.core_type<tc>, window_params = [{transform_indices = @transform_0, window_bounds = array<i64: 1, 16, 16>}, {transform_indices = @transform_1, window_bounds = array<i64: 1, 16, 16>}, {pipeline_mode = #tpu.pipeline_mode<synchronous>, transform_indices = @transform_2, window_bounds = array<i64: 16, 32>}, {pipeline_mode = #tpu.pipeline_mode<synchronous>, transform_indices = @transform_3, window_bounds = array<i64: 16, 32>}, {pipeline_mode = #tpu.pipeline_mode<synchronous>, transform_indices = @transform_4, window_bounds = array<i64: 1, 32>}, {transform_indices = @transform_5, window_bounds = array<i64: 32, 128>}, {transform_indices = @transform_6, window_bounds = array<i64: 1, 128>}, {transform_indices = @transform_7, window_bounds = array<i64: 1, 16, 16, 128>}]} {
    %c0_i32 = arith.constant 0 : i32
    %0 = arith.cmpi eq, %arg3, %c0_i32 : i32
    %1 = arith.extui %0 : i1 to i32
    %c0_i32_0 = arith.constant 0 : i32
    %2 = arith.cmpi ne, %1, %c0_i32_0 : i32
    scf.if %2 {
      %c0_10 = arith.constant 0 : index
      %c0_11 = arith.constant 0 : index
      %c0_12 = arith.constant 0 : index
      %14 = vector.load %arg4[%c0_10, %c0_11, %c0_12] : memref<1x16x16xbf16, #tpu.memory_space<vmem>>, vector<1x16x16xbf16>
      %15 = vector.shape_cast %14 : vector<1x16x16xbf16> to vector<16x16xbf16>
      %c0_13 = arith.constant 0 : index
      %c0_14 = arith.constant 0 : index
      %16 = vector.load %arg6[%c0_13, %c0_14] : memref<16x32xbf16, #tpu.memory_space<vmem>>, vector<16x32xbf16>
      %cst_15 = arith.constant dense<0.000000e+00> : vector<16x32xf32>
      %17 = tpu.matmul %15, %16, %cst_15 {dimension_numbers = #tpu.dot_dimension_numbers<[1], [0], [0], [1], [0, 0, 1, 1], [], []>} : vector<16x16xbf16>, vector<16x32xbf16>, vector<16x32xf32> -> vector<16x32xf32>
      %c0_16 = arith.constant 0 : index
      %c0_17 = arith.constant 0 : index
      %c0_18 = arith.constant 0 : index
      %18 = vector.load %arg5[%c0_16, %c0_17, %c0_18] : memref<1x16x16xbf16, #tpu.memory_space<vmem>>, vector<1x16x16xbf16>
      %19 = vector.shape_cast %18 : vector<1x16x16xbf16> to vector<16x16xbf16>
      %c0_19 = arith.constant 0 : index
      %c0_20 = arith.constant 0 : index
      %20 = vector.load %arg7[%c0_19, %c0_20] : memref<16x32xbf16, #tpu.memory_space<vmem>>, vector<16x32xbf16>
      %cst_21 = arith.constant dense<0.000000e+00> : vector<16x32xf32>
      %21 = tpu.matmul %19, %20, %cst_21 {dimension_numbers = #tpu.dot_dimension_numbers<[1], [0], [0], [1], [0, 0, 1, 1], [], []>} : vector<16x16xbf16>, vector<16x32xbf16>, vector<16x32xf32> -> vector<16x32xf32>
      %c0_22 = arith.constant 0 : index
      %c0_23 = arith.constant 0 : index
      %22 = vector.load %arg8[%c0_22, %c0_23] : memref<1x32xf32, #tpu.memory_space<vmem>>, vector<1x32xf32>
      %23 = vector.broadcast %22 : vector<1x32xf32> to vector<16x32xf32>
      %24 = arith.addf %21, %23 : vector<16x32xf32>
      %25 = vector.shape_cast %17 : vector<16x32xf32> to vector<16x1x32xf32>
      %26 = vector.shape_cast %24 : vector<16x32xf32> to vector<1x16x32xf32>
      %27 = vector.broadcast %25 : vector<16x1x32xf32> to vector<16x16x32xf32>
      %28 = vector.broadcast %26 : vector<1x16x32xf32> to vector<16x16x32xf32>
      %29 = arith.addf %27, %28 : vector<16x16x32xf32>
      %30 = math.tanh %29 : vector<16x16x32xf32>
      %31 = vector.shape_cast %30 : vector<16x16x32xf32> to vector<256x32xf32>
      %32 = arith.truncf %31 : vector<256x32xf32> to vector<256x32xbf16>
      %c0_24 = arith.constant 0 : index
      %c0_25 = arith.constant 0 : index
      %33 = vector.load %arg12[%c0_24, %c0_25] : memref<256x32xbf16, #tpu.memory_space<vmem>>, vector<256x32xbf16>
      tpu.vector_store %arg12[%c0_24, %c0_25], %32 {strides = array<i32>} : memref<256x32xbf16, #tpu.memory_space<vmem>>, vector<256x32xbf16>,
    } else {
    }
    %c0 = arith.constant 0 : index
    %c0_1 = arith.constant 0 : index
    %3 = vector.load %arg12[%c0, %c0_1] : memref<256x32xbf16, #tpu.memory_space<vmem>>, vector<256x32xbf16>
    %c0_2 = arith.constant 0 : index
    %c0_3 = arith.constant 0 : index
    %4 = vector.load %arg9[%c0_2, %c0_3] : memref<32x128xbf16, #tpu.memory_space<vmem>>, vector<32x128xbf16>
    %cst = arith.constant dense<0.000000e+00> : vector<256x128xf32>
    %5 = tpu.matmul %3, %4, %cst {dimension_numbers = #tpu.dot_dimension_numbers<[1], [0], [0], [1], [0, 0, 1, 1], [], []>} : vector<256x32xbf16>, vector<32x128xbf16>, vector<256x128xf32> -> vector<256x128xf32>
    %c0_4 = arith.constant 0 : index
    %c0_5 = arith.constant 0 : index
    %6 = vector.load %arg10[%c0_4, %c0_5] : memref<1x128xf32, #tpu.memory_space<vmem>>, vector<1x128xf32>
    %7 = vector.broadcast %6 : vector<1x128xf32> to vector<256x128xf32>
    %8 = arith.addf %5, %7 : vector<256x128xf32>
    %9 = vector.shape_cast %8 : vector<256x128xf32> to vector<16x16x128xf32>
    %10 = arith.truncf %9 : vector<16x16x128xf32> to vector<16x16x128xbf16>
    %c0_6 = arith.constant 0 : index
    %c0_7 = arith.constant 0 : index
    %c0_8 = arith.constant 0 : index
    %c0_9 = arith.constant 0 : index
    %11 = vector.load %arg11[%c0_6, %c0_7, %c0_8, %c0_9] : memref<1x16x16x128xbf16, #tpu.memory_space<vmem>>, vector<1x16x16x128xbf16>
    %12 = vector.shape_cast %11 : vector<1x16x16x128xbf16> to vector<16x16x128xbf16>
    %13 = vector.shape_cast %10 : vector<16x16x128xbf16> to vector<1x16x16x128xbf16>
    tpu.vector_store %arg11[%c0_6, %c0_7, %c0_8, %c0_9], %13 {strides = array<i32>} : memref<1x16x16x128xbf16, #tpu.memory_space<vmem>>, vector<1x16x16x128xbf16>,
    return
  }
  func.func @transform_0(%arg0: i32, %arg1: i32, %arg2: i32, %arg3: i32) -> (i32, i32, i32) {
    %c0_i32 = arith.constant 0 : i32
    %c0_i32_0 = arith.constant 0 : i32
    return %arg0, %arg1, %c0_i32 : i32, i32, i32
  }
  func.func @transform_1(%arg0: i32, %arg1: i32, %arg2: i32, %arg3: i32) -> (i32, i32, i32) {
    %c0_i32 = arith.constant 0 : i32
    %c0_i32_0 = arith.constant 0 : i32
    return %arg0, %arg2, %c0_i32 : i32, i32, i32
  }
  func.func @transform_2(%arg0: i32, %arg1: i32, %arg2: i32, %arg3: i32) -> (i32, i32) {
    %c0_i32 = arith.constant 0 : i32
    %c0_i32_0 = arith.constant 0 : i32
    %c0_i32_1 = arith.constant 0 : i32
    return %c0_i32, %c0_i32_0 : i32, i32
  }
  func.func @transform_3(%arg0: i32, %arg1: i32, %arg2: i32, %arg3: i32) -> (i32, i32) {
    %c0_i32 = arith.constant 0 : i32
    %c0_i32_0 = arith.constant 0 : i32
    %c0_i32_1 = arith.constant 0 : i32
    return %c0_i32, %c0_i32_0 : i32, i32
  }
  func.func @transform_4(%arg0: i32, %arg1: i32, %arg2: i32, %arg3: i32) -> (i32, i32) {
    %c0_i32 = arith.constant 0 : i32
    %c0_i32_0 = arith.constant 0 : i32
    %c0_i32_1 = arith.constant 0 : i32
    return %c0_i32, %c0_i32_0 : i32, i32
  }
  func.func @transform_5(%arg0: i32, %arg1: i32, %arg2: i32, %arg3: i32) -> (i32, i32) {
    %c0_i32 = arith.constant 0 : i32
    %c0_i32_0 = arith.constant 0 : i32
    return %c0_i32, %arg3 : i32, i32
  }
  func.func @transform_6(%arg0: i32, %arg1: i32, %arg2: i32, %arg3: i32) -> (i32, i32) {
    %c0_i32 = arith.constant 0 : i32
    %c0_i32_0 = arith.constant 0 : i32
    return %c0_i32, %arg3 : i32, i32
  }
  func.func @transform_7(%arg0: i32, %arg1: i32, %arg2: i32, %arg3: i32) -> (i32, i32, i32, i32) {
    %c0_i32 = arith.constant 0 : i32
    return %arg0, %arg1, %arg2, %arg3 : i32, i32, i32, i32
  }
}

</mosaic_0001>

<llo_original>
// kernel: tpu_custom_call.1
$region0: #{tpu_custom_call.1}
  #allocation0 [shape = 'u32[]', space=smem, size = 0x4, offset = 0x4, fixed_abs, tag = 'smem constant byte address 0x4 - core index']
  #allocation1 [shape = 'u32[144,128]{1,0:T(1,128)}', space=vmem, size = 0x12000, scoped, tag = 'internal scratch']
  #allocation2 [shape = 'bf16[256,32]{1,0:T(16,128)(2,1)}', space=vmem, size = 0x10000, scoped, tag = 'scratch operand']
  %s0 = inlined_call_operand.hbm [shape: bf16[2,16,16], index: 0, kind: input, shape index: {}]
  %s1 = inlined_call_operand.hbm [shape: bf16[2,16,16], index: 1, kind: input, shape index: {}]
  %s2 = inlined_call_operand.hbm [shape: bf16[16,32], index: 2, kind: input, shape index: {}]
  %s3 = inlined_call_operand.hbm [shape: bf16[16,32], index: 3, kind: input, shape index: {}]
  %s4 = inlined_call_operand.vmem [shape: f32[1,32], index: 4, kind: input, shape index: {}]
  %s5 = inlined_call_operand.vmem [shape: bf16[32,128], index: 5, kind: input, shape index: {}]
  %s6 = inlined_call_operand.vmem [shape: f32[1,128], index: 6, kind: input, shape index: {}]
  %s7 = inlined_call_operand.hbm [shape: bf16[2,16,16,128], index: 7, kind: output, shape index: {}]
  %s8 = sld [smem:[#allocation0]]
  $region81: #{tpu_custom_call.1} parent=0
    _
  %s10 = ssub.s32 1, %s8
  %s11 = scalar_select 0, %s10, %s8
  $region1: #{tpu_custom_call.1} parent=0
    #allocation3 [shape = 'u8[8192]{0}', space=vmem, size = 0x2000, scoped, tag = 'input window, operand 0']
    #allocation4 [shape = 's32[2]{0}', space=sflag, size = 0x8, scoped, tag = 'scoped memory for tpu_custom_call.1']
    #allocation5 [shape = 's32[2]{0}', space=sflag, size = 0x8, scoped, tag = 'scoped memory for tpu_custom_call.1']
    #allocation6 [shape = 'u8[8192]{0}', space=vmem, size = 0x2000, scoped, tag = 'input window, operand 1']
    #allocation7 [shape = 's32[2]{0}', space=sflag, size = 0x8, scoped, tag = 'scoped memory for tpu_custom_call.1']
    #allocation8 [shape = 'u8[4096]{0}', space=vmem, size = 0x1000, scoped, tag = 'input window, operand 2, single buffered']
    #allocation9 [shape = 'u8[4096]{0}', space=vmem, size = 0x1000, scoped, tag = 'input window, operand 3, single buffered']
    #allocation10 [shape = 's32[1]{0}', space=sflag, size = 0x4, scoped, tag = 'scoped memory for tpu_custom_call.1']
    #allocation11 [shape = 'u8[131072]{0}', space=vmem, size = 0x20000, scoped, tag = 'output window, operand 0']
    %12 = vsyncpa [#allocation4], 0
    %s13 = scalar_lea.sflag [#allocation4], 1
    %14 = vsyncpa %s13, 0
    %15 = vsyncpa [#allocation7], 0
    %s16 = scalar_lea.sflag [#allocation7], 1
    %17 = vsyncpa %s16, 0
    %18 = vsyncpa [#allocation10], 0
    %19 = vsyncpa [#allocation5], 0
    %s20 = scalar_lea.sflag [#allocation5], 1
    %21 = vsyncpa %s20, 0
    loop: start=0, step=1, limit=4
    $region2: #{tpu_custom_call.1} parent=1 // loop_pre_header
      _
    $region3: #{tpu_custom_call.1} parent=1 // loop_header
      %s23 = sphi 0, %s27
      %p24 = scmp.ge.s32.totalorder %s23, 4
      %s30 = sphi 0, %s56
      %s31 = sphi 0, %s52
      %s32 = sphi 0, %s48
      %s33 = sphi 0, %s44
      %s34 = sphi 0, %s30
      %s35 = sphi 0, %s31
      %s36 = sphi 0, %s32
      %s37 = sphi 0, %s33
      %s38 = sphi 0, %s34
      %s39 = sphi 0, %s35
      %s40 = sphi 0, %s36
      %s41 = sphi 0, %s37
      %s61 = sphi 0, %s63
      %s64 = sphi 0, %s61
      %s65 = sphi 0, %s64
      %s81 = sphi 0, %s65
      %s89 = sphi 0, %s91
      %s92 = sphi 0, %s89
      %s93 = sphi 0, %s92
      %s109 = sphi 0, %s93
      %s113 = sphi 0, %s113
      %s115 = sphi 0, %s113
      %s116 = sphi 0, %s115
      %s130 = sphi 0, %s116
      %s134 = sphi 0, %s134
      %s136 = sphi 0, %s134
      %s137 = sphi 0, %s136
      %s151 = sphi 0, %s137
      %s155 = sphi 0, %s155
      %s157 = sphi 0, %s155
      %s158 = sphi 0, %s157
      %s172 = sphi 0, %s158
      %s178 = sphi 0, %s180
      %s181 = sphi 0, %s178
      %s182 = sphi 0, %s181
      %s198 = sphi 0, %s182
      %s204 = sphi 0, %s206
      %s207 = sphi 0, %s204
      %s208 = sphi 0, %s207
      %s224 = sphi 0, %s208
      %s236 = sphi 0, %s238
      %s239 = sphi 0, %s236
      %s240 = sphi 0, %s239
      %s256 = sphi 0, %s240
    $region4: #{tpu_custom_call.1} parent=1 // loop_header_branch
      %26 = sbr.rel (%p24) target = $region8
    $region5: #{tpu_custom_call.1} parent=1 // loop_body
      %s28 = ssub.s32 %s23, 1
      %s29 = ssub.s32 %s23, 2
      %s42 = sadd.s32 1, %s33
      %p43 = scmp.ge.s32.totalorder %s42, 1
      %s44 = scalar_select %p43, 0, %s42
      %s45 = sadd.s32 1, %s32
      %s46 = scalar_select %p43, %s45, %s32
      %p47 = scmp.ge.s32.totalorder %s46, 1
      %s48 = scalar_select %p47, 0, %s46
      %s49 = sadd.s32 1, %s31
      %s50 = scalar_select %p47, %s49, %s31
      %p51 = scmp.ge.s32.totalorder %s50, 1
      %s52 = scalar_select %p51, 0, %s50
      %s53 = sadd.s32 1, %s30
      %s54 = scalar_select %p51, %s53, %s30
      %p55 = scmp.ge.s32.totalorder %s54, 2
      %s56 = scalar_select %p55, 0, %s54
      %s57 = ssub.s32 %s30, %s56
      %s58 = ssub.s32 %s31, %s52
      %s59 = sor.u32 %s57, %s58
      %p60 = scmp.eq.s32.totalorder %s59, 0
      %s62 = sadd.s32 %s61, 1
      %s63 = scalar_select %p60, %s61, %s62
      %p66 = pneg %p60
      %p67 = scmp.eq.s32.totalorder %s23, 1
      %p68 = por %p66, %p67
      %p69 = scmp.ne.s32.totalorder %s61, %s64
      %p70 = scmp.eq.s32.totalorder %s23, 0
      %p71 = por %p69, %p70
      %p72 = scmp.ne.s32.totalorder %s61, %s64
      %p73 = scmp.eq.s32.totalorder %s28, 1
      %p74 = por %p72, %p73
      %p75 = scmp.ne.s32.totalorder %s64, %s65
      %p76 = scmp.eq.s32.totalorder %s28, 0
      %p77 = por %p75, %p76
      %p78 = scmp.ne.s32.totalorder %s64, %s65
      %p79 = scmp.eq.s32.totalorder %s29, 1
      %p80 = por %p78, %p79
      %p82 = scmp.ne.s32.totalorder %s65, %s81
      %p83 = scmp.eq.s32.totalorder %s29, 0
      %p84 = por %p82, %p83
      %s85 = ssub.s32 %s30, %s56
      %s86 = ssub.s32 %s32, %s48
      %s87 = sor.u32 %s85, %s86
      %p88 = scmp.eq.s32.totalorder %s87, 0
      %s90 = sadd.s32 %s89, 1
      %s91 = scalar_select %p88, %s89, %s90
      %p94 = pneg %p88
      %p95 = scmp.eq.s32.totalorder %s23, 1
      %p96 = por %p94, %p95
      %p97 = scmp.ne.s32.totalorder %s89, %s92
      %p98 = scmp.eq.s32.totalorder %s23, 0
      %p99 = por %p97, %p98
      %p100 = scmp.ne.s32.totalorder %s89, %s92
      %p101 = scmp.eq.s32.totalorder %s28, 1
      %p102 = por %p100, %p101
      %p103 = scmp.ne.s32.totalorder %s92, %s93
      %p104 = scmp.eq.s32.totalorder %s28, 0
      %p105 = por %p103, %p104
      %p106 = scmp.ne.s32.totalorder %s92, %s93
      %p107 = scmp.eq.s32.totalorder %s29, 1
      %p108 = por %p106, %p107
      %p110 = scmp.ne.s32.totalorder %s93, %s109
      %p111 = scmp.eq.s32.totalorder %s29, 0
      %p112 = por %p110, %p111
      %s114 = sadd.s32 %s113, 1
      %p117 = scmp.eq.s32.totalorder %s23, 1
      %p118 = scmp.ne.s32.totalorder %s113, %s115
      %p119 = scmp.eq.s32.totalorder %s23, 0
      %p120 = por %p118, %p119
      %p121 = scmp.ne.s32.totalorder %s113, %s115
      %p122 = scmp.eq.s32.totalorder %s28, 1
      %p123 = por %p121, %p122
      %p124 = scmp.ne.s32.totalorder %s115, %s116
      %p125 = scmp.eq.s32.totalorder %s28, 0
      %p126 = por %p124, %p125
      %p127 = scmp.ne.s32.totalorder %s115, %s116
      %p128 = scmp.eq.s32.totalorder %s29, 1
      %p129 = por %p127, %p128
      %p131 = scmp.ne.s32.totalorder %s116, %s130
      %p132 = scmp.eq.s32.totalorder %s29, 0
      %p133 = por %p131, %p132
      %s135 = sadd.s32 %s134, 1
      %p138 = scmp.eq.s32.totalorder %s23, 1
      %p139 = scmp.ne.s32.totalorder %s134, %s136
      %p140 = scmp.eq.s32.totalorder %s23, 0
      %p141 = por %p139, %p140
      %p142 = scmp.ne.s32.totalorder %s134, %s136
      %p143 = scmp.eq.s32.totalorder %s28, 1
      %p144 = por %p142, %p143
      %p145 = scmp.ne.s32.totalorder %s136, %s137
      %p146 = scmp.eq.s32.totalorder %s28, 0
      %p147 = por %p145, %p146
      %p148 = scmp.ne.s32.totalorder %s136, %s137
      %p149 = scmp.eq.s32.totalorder %s29, 1
      %p150 = por %p148, %p149
      %p152 = scmp.ne.s32.totalorder %s137, %s151
      %p153 = scmp.eq.s32.totalorder %s29, 0
      %p154 = por %p152, %p153
      %s156 = sadd.s32 %s155, 1
      %p159 = scmp.eq.s32.totalorder %s23, 1
      %p160 = scmp.ne.s32.totalorder %s155, %s157
      %p161 = scmp.eq.s32.totalorder %s23, 0
      %p162 = por %p160, %p161
      %p163 = scmp.ne.s32.totalorder %s155, %s157
      %p164 = scmp.eq.s32.totalorder %s28, 1
      %p165 = por %p163, %p164
      %p166 = scmp.ne.s32.totalorder %s157, %s158
      %p167 = scmp.eq.s32.totalorder %s28, 0
      %p168 = por %p166, %p167
      %p169 = scmp.ne.s32.totalorder %s157, %s158
      %p170 = scmp.eq.s32.totalorder %s29, 1
      %p171 = por %p169, %p170
      %p173 = scmp.ne.s32.totalorder %s158, %s172
      %p174 = scmp.eq.s32.totalorder %s29, 0
      %p175 = por %p173, %p174
      %s176 = ssub.s32 %s33, %s44
      %p177 = scmp.eq.s32.totalorder %s176, 0
      %s179 = sadd.s32 %s178, 1
      %s180 = scalar_select %p177, %s178, %s179
      %p183 = pneg %p177
      %p184 = scmp.eq.s32.totalorder %s23, 1
      %p185 = por %p183, %p184
      %p186 = scmp.ne.s32.totalorder %s178, %s181
      %p187 = scmp.eq.s32.totalorder %s23, 0
      %p188 = por %p186, %p187
      %p189 = scmp.ne.s32.totalorder %s178, %s181
      %p190 = scmp.eq.s32.totalorder %s28, 1
      %p191 = por %p189, %p190
      %p192 = scmp.ne.s32.totalorder %s181, %s182
      %p193 = scmp.eq.s32.totalorder %s28, 0
      %p194 = por %p192, %p193
      %p195 = scmp.ne.s32.totalorder %s181, %s182
      %p196 = scmp.eq.s32.totalorder %s29, 1
      %p197 = por %p195, %p196
      %p199 = scmp.ne.s32.totalorder %s182, %s198
      %p200 = scmp.eq.s32.totalorder %s29, 0
      %p201 = por %p199, %p200
      %s202 = ssub.s32 %s33, %s44
      %p203 = scmp.eq.s32.totalorder %s202, 0
      %s205 = sadd.s32 %s204, 1
      %s206 = scalar_select %p203, %s204, %s205
      %p209 = pneg %p203
      %p210 = scmp.eq.s32.totalorder %s23, 1
      %p211 = por %p209, %p210
      %p212 = scmp.ne.s32.totalorder %s204, %s207
      %p213 = scmp.eq.s32.totalorder %s23, 0
      %p214 = por %p212, %p213
      %p215 = scmp.ne.s32.totalorder %s204, %s207
      %p216 = scmp.eq.s32.totalorder %s28, 1
      %p217 = por %p215, %p216
      %p218 = scmp.ne.s32.totalorder %s207, %s208
      %p219 = scmp.eq.s32.totalorder %s28, 0
      %p220 = por %p218, %p219
      %p221 = scmp.ne.s32.totalorder %s207, %s208
      %p222 = scmp.eq.s32.totalorder %s29, 1
      %p223 = por %p221, %p222
      %p225 = scmp.ne.s32.totalorder %s208, %s224
      %p226 = scmp.eq.s32.totalorder %s29, 0
      %p227 = por %p225, %p226
      %s228 = ssub.s32 %s30, %s56
      %s229 = ssub.s32 %s31, %s52
      %s230 = sor.u32 %s228, %s229
      %s231 = ssub.s32 %s32, %s48
      %s232 = sor.u32 %s230, %s231
      %s233 = ssub.s32 %s33, %s44
      %s234 = sor.u32 %s232, %s233
      %p235 = scmp.eq.s32.totalorder %s234, 0
      %s237 = sadd.s32 %s236, 1
      %s238 = scalar_select %p235, %s236, %s237
      %p241 = pneg %p235
      %p242 = scmp.eq.s32.totalorder %s23, 1
      %p243 = por %p241, %p242
      %p244 = scmp.ne.s32.totalorder %s236, %s239
      %p245 = scmp.eq.s32.totalorder %s23, 0
      %p246 = por %p244, %p245
      %p247 = scmp.ne.s32.totalorder %s236, %s239
      %p248 = scmp.eq.s32.totalorder %s28, 1
      %p249 = por %p247, %p248
      %p250 = scmp.ne.s32.totalorder %s239, %s240
      %p251 = scmp.eq.s32.totalorder %s28, 0
      %p252 = por %p250, %p251
      %p253 = scmp.ne.s32.totalorder %s239, %s240
      %p254 = scmp.eq.s32.totalorder %s29, 1
      %p255 = por %p253, %p254
      %p257 = scmp.ne.s32.totalorder %s240, %s256
      %p258 = scmp.eq.s32.totalorder %s29, 0
      %p259 = por %p257, %p258
      %p260 = scmp.le.s32.totalorder 1, %s23
      %p261 = scmp.lt.s32.totalorder %s23, 3
      %p262 = pnand %p260, %p261
      %p263 = pneg %p262
      // Predicated region
      $region9: #{tpu_custom_call.1} parent=5 // pred_check
        _
      $region10: #{tpu_custom_call.1} parent=5 // pred_check_branch
        %265 = sbr.rel (%p262) target = $region12
      $region11: #{tpu_custom_call.1} parent=5 // pred_region
        %s266 = ssub.s32 %s23, 1
        // Predicated region
        $region13: #{tpu_custom_call.1} parent=11 // pred_check
          %p267 = pneg %p126
        $region14: #{tpu_custom_call.1} parent=11 // pred_check_branch
          %269 = sbr.rel (%p267) target = $region16
        $region15: #{tpu_custom_call.1} parent=11 // pred_region
          %s271 = ssub.s32 128, 128
          %272 = vsyncadd [#allocation7], %s271
          %s273 = sshll.u32 [#allocation8], 4
          %s274 = int_to_ptr.vmem [resolvable:$true] %s273
          %279 = dma.hbm_to_vmem [thread:$0]  %s2, 128, %s274, [#allocation7], 64, 64, 4
        $region16: #{tpu_custom_call.1} parent=11 // pred_fallthru
          _
        // Predicated region
        $region17: #{tpu_custom_call.1} parent=11 // pred_check
          %p280 = pneg %p147
        $region18: #{tpu_custom_call.1} parent=11 // pred_check_branch
          %282 = sbr.rel (%p280) target = $region20
        $region19: #{tpu_custom_call.1} parent=11 // pred_region
          %s284 = ssub.s32 128, 128
          %285 = vsyncadd [#allocation10], %s284
          %s286 = sshll.u32 [#allocation9], 4
          %s287 = int_to_ptr.vmem [resolvable:$true] %s286
          %292 = dma.hbm_to_vmem [thread:$0]  %s3, 128, %s287, [#allocation10], 64, 64, 4
        $region20: #{tpu_custom_call.1} parent=11 // pred_fallthru
          _
        // Predicated region
        $region21: #{tpu_custom_call.1} parent=11 // pred_check
          %p293 = pneg %p168
        $region22: #{tpu_custom_call.1} parent=11 // pred_check_branch
          %295 = sbr.rel (%p293) target = $region24
        $region23: #{tpu_custom_call.1} parent=11 // pred_region
          _
        $region24: #{tpu_custom_call.1} parent=11 // pred_fallthru
          _
        // Predicated region
        $region25: #{tpu_custom_call.1} parent=11 // pred_check
          %p296 = pneg %p194
        $region26: #{tpu_custom_call.1} parent=11 // pred_check_branch
          %298 = sbr.rel (%p296) target = $region28
        $region27: #{tpu_custom_call.1} parent=11 // pred_region
          %p299 = scmp.lt.s32.totalorder %s37, 0
          %s300 = scalar_select %p299, %s37, 0
          %s301 = smul.addr %s300, 4
          %s302 = scalar_lea.vmem %s5, %s301
        $region28: #{tpu_custom_call.1} parent=11 // pred_fallthru
          _
        // Predicated region
        $region29: #{tpu_custom_call.1} parent=11 // pred_check
          %p303 = pneg %p220
        $region30: #{tpu_custom_call.1} parent=11 // pred_check_branch
          %305 = sbr.rel (%p303) target = $region32
        $region31: #{tpu_custom_call.1} parent=11 // pred_region
          %p306 = scmp.lt.s32.totalorder %s37, 0
          %s307 = scalar_select %p306, %s37, 0
          %s308 = scalar_lea.vmem %s6, %s307
        $region32: #{tpu_custom_call.1} parent=11 // pred_fallthru
          _
      $region12: #{tpu_custom_call.1} parent=5 // pred_fallthru
        _
      %p309 = scmp.lt.s32.totalorder %s23, 2
      // Predicated region
      $region33: #{tpu_custom_call.1} parent=5 // pred_check
        %p310 = pneg %p309
      $region34: #{tpu_custom_call.1} parent=5 // pred_check_branch
        %312 = sbr.rel (%p310) target = $region36
      $region35: #{tpu_custom_call.1} parent=5 // pred_region
        // Predicated region
        $region37: #{tpu_custom_call.1} parent=35 // pred_check
          %p313 = pneg %p71
        $region38: #{tpu_custom_call.1} parent=35 // pred_check_branch
          %315 = sbr.rel (%p313) target = $region40
        $region39: #{tpu_custom_call.1} parent=35 // pred_region
          %s316 = sand.u32 %s61, 1
          %s317 = scalar_lea.sflag [#allocation4], %s316
          %s318 = sand.u32 %s61, 1
          %s319 = smul.addr %s318, 8
          %s320 = scalar_lea.vmem [#allocation3], %s319
          %s321 = smul.u32 2, %s31
          %s323 = ssub.s32 128, 128
          %324 = vsyncadd %s317, %s323
          %s325 = smul.addr %s30, 2
          %s326 = sadd.s32 %s321, %s325
          %s327 = smul.addr %s326, 64
          %s328 = scalar_lea.hbm %s0, %s327
          %s329 = sshll.u32 %s320, 4
          %s330 = int_to_ptr.vmem [resolvable:$true] %s329
          %335 = dma.hbm_to_vmem [thread:$0]  %s328, 128, %s330, %s317, 64, 64, 4
        $region40: #{tpu_custom_call.1} parent=35 // pred_fallthru
          _
        // Predicated region
        $region41: #{tpu_custom_call.1} parent=35 // pred_check
          %p336 = pneg %p99
        $region42: #{tpu_custom_call.1} parent=35 // pred_check_branch
          %338 = sbr.rel (%p336) target = $region44
        $region43: #{tpu_custom_call.1} parent=35 // pred_region
          %s339 = sand.u32 %s23, 1
          %s340 = scalar_lea.sflag [#allocation7], %s339
          %s341 = sand.u32 %s89, 1
          %s342 = smul.addr %s341, 8
          %s343 = scalar_lea.vmem [#allocation6], %s342
          %s344 = smul.u32 2, %s32
          %s346 = ssub.s32 128, 128
          %347 = vsyncadd %s340, %s346
          %s348 = smul.addr %s30, 2
          %s349 = sadd.s32 %s344, %s348
          %s350 = smul.addr %s349, 64
          %s351 = scalar_lea.hbm %s1, %s350
          %s352 = sshll.u32 %s343, 4
          %s353 = int_to_ptr.vmem [resolvable:$true] %s352
          %358 = dma.hbm_to_vmem [thread:$0]  %s351, 128, %s353, %s340, 64, 64, 4
        $region44: #{tpu_custom_call.1} parent=35 // pred_fallthru
          _
      $region36: #{tpu_custom_call.1} parent=5 // pred_fallthru
        _
      %p359 = scmp.le.s32.totalorder 1, %s23
      %p360 = scmp.lt.s32.totalorder %s23, 3
      %p361 = pnand %p359, %p360
      %p362 = pneg %p361
      // Predicated region
      $region45: #{tpu_custom_call.1} parent=5 // pred_check
        _
      $region46: #{tpu_custom_call.1} parent=5 // pred_check_branch
        %364 = sbr.rel (%p361) target = $region48
      $region47: #{tpu_custom_call.1} parent=5 // pred_region
        %s365 = ssub.s32 %s23, 1
        %s366 = sand.u32 %s64, 1
        %s367 = scalar_lea.sflag [#allocation4], %s366
        %s368 = sand.u32 %s64, 1
        %s369 = smul.addr %s368, 8
        %s370 = scalar_lea.vmem [#allocation3], %s369
        // Predicated region
        $region49: #{tpu_custom_call.1} parent=47 // pred_check
          %p371 = pneg %p77
        $region50: #{tpu_custom_call.1} parent=47 // pred_check_branch
          %373 = sbr.rel (%p371) target = $region52
        $region51: #{tpu_custom_call.1} parent=47 // pred_region
          %374 = dma.done %s367, 128
        $region52: #{tpu_custom_call.1} parent=47 // pred_fallthru
          _
        %s375 = sand.u32 %s28, 1
        %s376 = scalar_lea.sflag [#allocation7], %s375
        %s377 = sand.u32 %s92, 1
        %s378 = smul.addr %s377, 8
        %s379 = scalar_lea.vmem [#allocation6], %s378
        // Predicated region
        $region53: #{tpu_custom_call.1} parent=47 // pred_check
          %p380 = pneg %p105
        $region54: #{tpu_custom_call.1} parent=47 // pred_check_branch
          %382 = sbr.rel (%p380) target = $region56
        $region55: #{tpu_custom_call.1} parent=47 // pred_region
          %383 = dma.done %s376, 128
        $region56: #{tpu_custom_call.1} parent=47 // pred_fallthru
          _
        // Predicated region
        $region57: #{tpu_custom_call.1} parent=47 // pred_check
          %p384 = pneg %p126
        $region58: #{tpu_custom_call.1} parent=47 // pred_check_branch
          %386 = sbr.rel (%p384) target = $region60
        $region59: #{tpu_custom_call.1} parent=47 // pred_region
          %387 = dma.done [#allocation7], 128
        $region60: #{tpu_custom_call.1} parent=47 // pred_fallthru
          _
        // Predicated region
        $region61: #{tpu_custom_call.1} parent=47 // pred_check
          %p388 = pneg %p147
        $region62: #{tpu_custom_call.1} parent=47 // pred_check_branch
          %390 = sbr.rel (%p388) target = $region64
        $region63: #{tpu_custom_call.1} parent=47 // pred_region
          %391 = dma.done [#allocation10], 128
        $region64: #{tpu_custom_call.1} parent=47 // pred_fallthru
          _
        %s392 = sand.u32 %s64, 1
        %s393 = scalar_lea.sflag [#allocation4], %s392
        %s394 = sand.u32 %s64, 1
        %s395 = smul.addr %s394, 8
        %s396 = scalar_lea.vmem [#allocation3], %s395
        %p397 = pneg %p77
        %p398 = pneg %p74
        %s399 = sand.u32 %s28, 1
        %s400 = scalar_lea.sflag [#allocation7], %s399
        %s401 = sand.u32 %s92, 1
        %s402 = smul.addr %s401, 8
        %s403 = scalar_lea.vmem [#allocation6], %s402
        %p404 = pneg %p105
        %p405 = pneg %p102
        %p406 = pneg %p126
        %p407 = pneg %p123
        %p408 = pneg %p147
        %p409 = pneg %p144
        %p410 = pneg %p168
        %p411 = pneg %p165
        %p412 = scmp.lt.s32.totalorder %s37, 0
        %s413 = scalar_select %p412, %s37, 0
        %s414 = smul.addr %s413, 4
        %s415 = scalar_lea.vmem %s5, %s414
        %p416 = pneg %p194
        %p417 = pneg %p191
        %p418 = scmp.lt.s32.totalorder %s37, 0
        %s419 = scalar_select %p418, %s37, 0
        %s420 = scalar_lea.vmem %s6, %s419
        %p421 = pneg %p220
        %p422 = pneg %p217
        %p423 = pneg %p252
        %p424 = pneg %p249
        %s425 = sand.u32 %s239, 1
        %s426 = scalar_lea.sflag [#allocation5], %s425
        %s427 = sand.u32 %s239, 1
        %s428 = smul.addr %s427, 128
        %s429 = scalar_lea.vmem [#allocation11], %s428
        %s430 = smul.u32 2, %s35
        %s431 = smul.u32 2, %s36
        %p432 = scmp.lt.s32.totalorder %s37, 0
        %s433 = scalar_select %p432, %s37, 0
        %s434 = smul.addr %s433, 4
        %s435 = scalar_lea.vmem %s5, %s434
        %p436 = scmp.lt.s32.totalorder %s37, 0
        %s437 = scalar_select %p436, %s37, 0
        %s438 = scalar_lea.vmem %s6, %s437
        %s439 = smul.u32 16, %s35
        %s440 = smul.u32 2, %s36
        %p442 = scmp.eq.s32.totalorder %s37, 0
        // Predicated region
        $region65: #{tpu_custom_call.1} parent=47 // pred_check
          %p443 = pneg %p442
        $region66: #{tpu_custom_call.1} parent=47 // pred_check_branch
          %445 = sbr.rel (%p443) target = $region68
        $region67: #{tpu_custom_call.1} parent=47 // pred_region
          %v446 = vld [vmem:[%s370] sm:$0xf]
          %v447 = vld [vmem:[%s370 + $0x4] sm:$0xf]
          %v448 = vld [vmem:[#allocation8] sm:$0xf]
          %v449 = vld [vmem:[#allocation8 + $0x4] sm:$0xf]
          %v452 = vunpack.c.l.b16 %v446
          %v453 = vunpack.c.l.b16 %v447
          %v454 = vpack.c.b16 %v453, %v452
          %v457 = vunpack.c.l.b16 %v448
          %v458 = vunpack.c.l.b16 %v449
          %v459 = vpack.c.b16 %v458, %v457
          %vm461 = vcmask 130048
          %v463 = vsel %vm461, %v454, 0
          %465 = vmatprep.subr.bf16.mxu0 0
          %466 = vmatpush1.bf16.msra.mxu0 %v459
          %467 = vmatprep.subr.bf16.mxu0 0
          %468 = vmatpush1.bf16.msra.mxu0 0
          %469 = vmatprep.subr.bf16.mxu0 0
          %470 = vmatpush1.bf16.msra.mxu0 0
          %471 = vmatprep.subr.bf16.mxu0 0
          %472 = vmatpush1.bf16.msra.mxu0 0
          %473 = vmatprep.subr.bf16.mxu0 0
          %474 = vmatpush1.bf16.msra.mxu0 0
          %475 = vmatprep.subr.bf16.mxu0 0
          %476 = vmatpush1.bf16.msra.mxu0 0
          %477 = vmatprep.subr.bf16.mxu0 0
          %478 = vmatpush1.bf16.msra.mxu0 0
          %479 = vmatprep.subr.bf16.mxu0 0
          %480 = vmatpush1.bf16.msra.mxu0 0
          %481 = vmatprep.subr.bf16.mxu0 0
          %482 = vmatpush1.bf16.msra.mxu0 0
          %483 = vmatprep.subr.bf16.mxu0 0
          %484 = vmatpush1.bf16.msra.mxu0 0
          %485 = vmatprep.subr.bf16.mxu0 0
          %486 = vmatpush1.bf16.msra.mxu0 0
          %487 = vmatprep.subr.bf16.mxu0 0
          %488 = vmatpush1.bf16.msra.mxu0 0
          %489 = vmatprep.subr.bf16.mxu0 0
          %490 = vmatpush1.bf16.msra.mxu0 0
          %491 = vmatprep.subr.bf16.mxu0 0
          %492 = vmatpush1.bf16.msra.mxu0 0
          %493 = vmatprep.subr.bf16.mxu0 0
          %494 = vmatpush1.bf16.msra.mxu0 0
          %495 = vmatprep.subr.bf16.mxu0 0
          %496 = vmatpush1.bf16.msra.mxu0 0
          %497 = vmatprep.mubr.bf16.mxu0 0
          %498 = vmatmul.mubr.bf16.gmra.mrb[0].mxu0 %v463
          %v499 = vpop.f32.mrb[0].mxu0
          %v500 = vadd.f32 0.0, %v499
          %v501 = vpop.f32.mrb[0].mxu0
          %v502 = vpop.f32.mrb[0].mxu0
          %v503 = vadd.f32 0.0, %v502
          %v504 = vpop.f32.mrb[0].mxu0
          %505 = vdwg.mxu0
          %v506 = vld [vmem:[%s379] sm:$0xf]
          %v507 = vld [vmem:[%s379 + $0x4] sm:$0xf]
          %v508 = vld [vmem:[#allocation9] sm:$0xf]
          %v509 = vld [vmem:[#allocation9 + $0x4] sm:$0xf]
          %v510 = vld [vmem:[%s4] sm:$0x1]
          %v512 = vlaneseq
          %v513 = vshrl.u32 %v512, 7
          %v514 = vsub.s32 0, %v513
          %v515 = vrot.slane %v510, %v514
          %v519 = vunpack.c.l.b16 %v506
          %v520 = vunpack.c.l.b16 %v507
          %v521 = vpack.c.b16 %v520, %v519
          %v524 = vunpack.c.l.b16 %v508
          %v525 = vunpack.c.l.b16 %v509
          %v526 = vpack.c.b16 %v525, %v524
          %v529 = vsel %vm461, %v521, 0
          %531 = vmatprep.subr.bf16.mxu0 0
          %532 = vmatpush1.bf16.msra.mxu0 %v526
          %533 = vmatprep.subr.bf16.mxu0 0
          %534 = vmatpush1.bf16.msra.mxu0 0
          %535 = vmatprep.subr.bf16.mxu0 0
          %536 = vmatpush1.bf16.msra.mxu0 0
          %537 = vmatprep.subr.bf16.mxu0 0
          %538 = vmatpush1.bf16.msra.mxu0 0
          %539 = vmatprep.subr.bf16.mxu0 0
          %540 = vmatpush1.bf16.msra.mxu0 0
          %541 = vmatprep.subr.bf16.mxu0 0
          %542 = vmatpush1.bf16.msra.mxu0 0
          %543 = vmatprep.subr.bf16.mxu0 0
          %544 = vmatpush1.bf16.msra.mxu0 0
          %545 = vmatprep.subr.bf16.mxu0 0
          %546 = vmatpush1.bf16.msra.mxu0 0
          %547 = vmatprep.subr.bf16.mxu0 0
          %548 = vmatpush1.bf16.msra.mxu0 0
          %549 = vmatprep.subr.bf16.mxu0 0
          %550 = vmatpush1.bf16.msra.mxu0 0
          %551 = vmatprep.subr.bf16.mxu0 0
          %552 = vmatpush1.bf16.msra.mxu0 0
          %553 = vmatprep.subr.bf16.mxu0 0
          %554 = vmatpush1.bf16.msra.mxu0 0
          %555 = vmatprep.subr.bf16.mxu0 0
          %556 = vmatpush1.bf16.msra.mxu0 0
          %557 = vmatprep.subr.bf16.mxu0 0
          %558 = vmatpush1.bf16.msra.mxu0 0
          %559 = vmatprep.subr.bf16.mxu0 0
          %560 = vmatpush1.bf16.msra.mxu0 0
          %561 = vmatprep.subr.bf16.mxu0 0
          %562 = vmatpush1.bf16.msra.mxu0 0
          %563 = vmatprep.mubr.bf16.mxu0 0
          %564 = vmatmul.mubr.bf16.gmra.mrb[0].mxu0 %v529
          %v565 = vpop.f32.mrb[0].mxu0
          %v566 = vadd.f32 %v515, %v565
          %v567 = vpop.f32.mrb[0].mxu0
          %v568 = vpop.f32.mrb[0].mxu0
          %v569 = vadd.f32 %v515, %v568
          %v570 = vpop.f32.mrb[0].mxu0
          %571 = vdwg.mxu0
          %v574 = vcombine.high %v500, %v500
          %v576 = vunpack.c.l.s4 1966171168
          %v577 = vunpack.c.0.s8 %v576
          %v578 = vlaneseq
          %v579 = vshrl.u32 %v578, 7
          %v580 = vsub.s32 %v577, %v579
          %v581 = vrot.slane %v500, %v580
          %v583 = vunpack.c.l.s4 1966171168
          %v584 = vunpack.c.0.s8 %v583
          %v585 = vlaneseq
          %v586 = vshrl.u32 %v585, 7
          %v587 = vsub.s32 %v584, %v586
          %v588 = vrot.slane %v574, %v587
          %v589 = vcombine.high %v581, %v581
          %v590 = vcombine.high %v588, %v588
          %v592 = vunpack.c.l.s4 1966171168
          %v593 = vunpack.c.0.s8 %v592
          %v594 = vlaneseq
          %v595 = vshrl.u32 %v594, 7
          %v596 = vsub.s32 %v593, %v595
          %v597 = vrot.slane %v581, %v596
          %v599 = vunpack.c.l.s4 1966171168
          %v600 = vunpack.c.0.s8 %v599
          %v601 = vlaneseq
          %v602 = vshrl.u32 %v601, 7
          %v603 = vsub.s32 %v600, %v602
          %v604 = vrot.slane %v588, %v603
          %v606 = vunpack.c.l.s4 1966171168
          %v607 = vunpack.c.0.s8 %v606
          %v608 = vlaneseq
          %v609 = vshrl.u32 %v608, 7
          %v610 = vsub.s32 %v607, %v609
          %v611 = vrot.slane %v589, %v610
          %v613 = vunpack.c.l.s4 1966171168
          %v614 = vunpack.c.0.s8 %v613
          %v615 = vlaneseq
          %v616 = vshrl.u32 %v615, 7
          %v617 = vsub.s32 %v614, %v616
          %v618 = vrot.slane %v590, %v617
          %v619 = vcombine.high %v597, %v597
          %v620 = vcombine.high %v604, %v604
          %v621 = vcombine.high %v611, %v611
          %v622 = vcombine.high %v618, %v618
          %v623 = vcombine.high %v503, %v503
          %v625 = vunpack.c.l.s4 1966171168
          %v626 = vunpack.c.0.s8 %v625
          %v627 = vlaneseq
          %v628 = vshrl.u32 %v627, 7
          %v629 = vsub.s32 %v626, %v628
          %v630 = vrot.slane %v503, %v629
          %v632 = vunpack.c.l.s4 1966171168
          %v633 = vunpack.c.0.s8 %v632
          %v634 = vlaneseq
          %v635 = vshrl.u32 %v634, 7
          %v636 = vsub.s32 %v633, %v635
          %v637 = vrot.slane %v623, %v636
          %v638 = vcombine.high %v630, %v630
          %v639 = vcombine.high %v637, %v637
          %v641 = vunpack.c.l.s4 1966171168
          %v642 = vunpack.c.0.s8 %v641
          %v643 = vlaneseq
          %v644 = vshrl.u32 %v643, 7
          %v645 = vsub.s32 %v642, %v644
          %v646 = vrot.slane %v630, %v645
          %v648 = vunpack.c.l.s4 1966171168
          %v649 = vunpack.c.0.s8 %v648
          %v650 = vlaneseq
          %v651 = vshrl.u32 %v650, 7
          %v652 = vsub.s32 %v649, %v651
          %v653 = vrot.slane %v637, %v652
          %v655 = vunpack.c.l.s4 1966171168
          %v656 = vunpack.c.0.s8 %v655
          %v657 = vlaneseq
          %v658 = vshrl.u32 %v657, 7
          %v659 = vsub.s32 %v656, %v658
          %v660 = vrot.slane %v638, %v659
          %v662 = vunpack.c.l.s4 1966171168
          %v663 = vunpack.c.0.s8 %v662
          %v664 = vlaneseq
          %v665 = vshrl.u32 %v664, 7
          %v666 = vsub.s32 %v663, %v665
          %v667 = vrot.slane %v639, %v666
          %v668 = vcombine.high %v646, %v646
          %v669 = vcombine.high %v653, %v653
          %v670 = vcombine.high %v660, %v660
          %v671 = vcombine.high %v667, %v667
          %v672 = vlaneseq
          %v673 = vshrl.u32 %v672, 7
          %v674 = vsub.s32 0, %v673
          %v675 = vrot.slane %v597, %v674
          %v676 = vlaneseq
          %v677 = vshrl.u32 %v676, 7
          %v678 = vsub.s32 0, %v677
          %v679 = vrot.slane %v611, %v678
          %v680 = vlaneseq
          %v681 = vshrl.u32 %v680, 7
          %v682 = vsub.s32 0, %v681
          %v683 = vrot.slane %v619, %v682
          %v684 = vlaneseq
          %v685 = vshrl.u32 %v684, 7
          %v686 = vsub.s32 0, %v685
          %v687 = vrot.slane %v621, %v686
          %v688 = vlaneseq
          %v689 = vshrl.u32 %v688, 7
          %v690 = vsub.s32 0, %v689
          %v691 = vrot.slane %v604, %v690
          %v692 = vlaneseq
          %v693 = vshrl.u32 %v692, 7
          %v694 = vsub.s32 0, %v693
          %v695 = vrot.slane %v618, %v694
          %v696 = vlaneseq
          %v697 = vshrl.u32 %v696, 7
          %v698 = vsub.s32 0, %v697
          %v699 = vrot.slane %v620, %v698
          %v700 = vlaneseq
          %v701 = vshrl.u32 %v700, 7
          %v702 = vsub.s32 0, %v701
          %v703 = vrot.slane %v622, %v702
          %v704 = vlaneseq
          %v705 = vshrl.u32 %v704, 7
          %v706 = vsub.s32 0, %v705
          %v707 = vrot.slane %v646, %v706
          %v708 = vlaneseq
          %v709 = vshrl.u32 %v708, 7
          %v710 = vsub.s32 0, %v709
          %v711 = vrot.slane %v660, %v710
          %v712 = vlaneseq
          %v713 = vshrl.u32 %v712, 7
          %v714 = vsub.s32 0, %v713
          %v715 = vrot.slane %v668, %v714
          %v716 = vlaneseq
          %v717 = vshrl.u32 %v716, 7
          %v718 = vsub.s32 0, %v717
          %v719 = vrot.slane %v670, %v718
          %v720 = vlaneseq
          %v721 = vshrl.u32 %v720, 7
          %v722 = vsub.s32 0, %v721
          %v723 = vrot.slane %v653, %v722
          %v724 = vlaneseq
          %v725 = vshrl.u32 %v724, 7
          %v726 = vsub.s32 0, %v725
          %v727 = vrot.slane %v667, %v726
          %v728 = vlaneseq
          %v729 = vshrl.u32 %v728, 7
          %v730 = vsub.s32 0, %v729
          %v731 = vrot.slane %v669, %v730
          %v732 = vlaneseq
          %v733 = vshrl.u32 %v732, 7
          %v734 = vsub.s32 0, %v733
          %v735 = vrot.slane %v671, %v734
          %v752 = vadd.f32 %v675, %v566
          %v753 = vadd.f32 %v675, %v569
          %v754 = vadd.f32 %v679, %v566
          %v755 = vadd.f32 %v679, %v569
          %v756 = vadd.f32 %v683, %v566
          %v757 = vadd.f32 %v683, %v569
          %v758 = vadd.f32 %v687, %v566
          %v759 = vadd.f32 %v687, %v569
          %v760 = vadd.f32 %v691, %v566
          %v761 = vadd.f32 %v691, %v569
          %v762 = vadd.f32 %v695, %v566
          %v763 = vadd.f32 %v695, %v569
          %v764 = vadd.f32 %v699, %v566
          %v765 = vadd.f32 %v699, %v569
          %v766 = vadd.f32 %v703, %v566
          %v767 = vadd.f32 %v703, %v569
          %v768 = vadd.f32 %v707, %v566
          %v769 = vadd.f32 %v707, %v569
          %v770 = vadd.f32 %v711, %v566
          %v771 = vadd.f32 %v711, %v569
          %v772 = vadd.f32 %v715, %v566
          %v773 = vadd.f32 %v715, %v569
          %v774 = vadd.f32 %v719, %v566
          %v775 = vadd.f32 %v719, %v569
          %v776 = vadd.f32 %v723, %v566
          %v777 = vadd.f32 %v723, %v569
          %v778 = vadd.f32 %v727, %v566
          %v779 = vadd.f32 %v727, %v569
          %v780 = vadd.f32 %v731, %v566
          %v781 = vadd.f32 %v731, %v569
          %v782 = vadd.f32 %v735, %v566
          %v783 = vadd.f32 %v735, %v569
          %v784 = vtanh.pop %v752
          %v785 = vtanh.pop %v753
          %v786 = vtanh.pop %v754
          %v787 = vtanh.pop %v755
          %v788 = vtanh.pop %v756
          %v789 = vtanh.pop %v757
          %v790 = vtanh.pop %v758
          %v791 = vtanh.pop %v759
          %v792 = vtanh.pop %v760
          %v793 = vtanh.pop %v761
          %v794 = vtanh.pop %v762
          %v795 = vtanh.pop %v763
          %v796 = vtanh.pop %v764
          %v797 = vtanh.pop %v765
          %v798 = vtanh.pop %v766
          %v799 = vtanh.pop %v767
          %v800 = vtanh.pop %v768
          %v801 = vtanh.pop %v769
          %v802 = vtanh.pop %v770
          %v803 = vtanh.pop %v771
          %v804 = vtanh.pop %v772
          %v805 = vtanh.pop %v773
          %v806 = vtanh.pop %v774
          %v807 = vtanh.pop %v775
          %v808 = vtanh.pop %v776
          %v809 = vtanh.pop %v777
          %v810 = vtanh.pop %v778
          %v811 = vtanh.pop %v779
          %v812 = vtanh.pop %v780
          %v813 = vtanh.pop %v781
          %v814 = vtanh.pop %v782
          %v815 = vtanh.pop %v783
          %v816 = vpack.c.bf16 %v785, %v784
          %v817 = vpack.c.bf16 %v787, %v786
          %v818 = vpack.c.bf16 %v789, %v788
          %v819 = vpack.c.bf16 %v791, %v790
          %v820 = vpack.c.bf16 %v793, %v792
          %v821 = vpack.c.bf16 %v795, %v794
          %v822 = vpack.c.bf16 %v797, %v796
          %v823 = vpack.c.bf16 %v799, %v798
          %v824 = vpack.c.bf16 %v801, %v800
          %v825 = vpack.c.bf16 %v803, %v802
          %v826 = vpack.c.bf16 %v805, %v804
          %v827 = vpack.c.bf16 %v807, %v806
          %v828 = vpack.c.bf16 %v809, %v808
          %v829 = vpack.c.bf16 %v811, %v810
          %v830 = vpack.c.bf16 %v813, %v812
          %v831 = vpack.c.bf16 %v815, %v814
          %vm832 = vcmask 261120
          %833 = vst.msk [vmem:[#allocation2] sm:$0xff] %vm832, %v816
          %834 = vst.msk [vmem:[#allocation2 + $0x8] sm:$0xff] %vm832, %v817
          %835 = vst.msk [vmem:[#allocation2 + $0x10] sm:$0xff] %vm832, %v818
          %836 = vst.msk [vmem:[#allocation2 + $0x18] sm:$0xff] %vm832, %v819
          %837 = vst.msk [vmem:[#allocation2 + $0x20] sm:$0xff] %vm832, %v820
          %838 = vst.msk [vmem:[#allocation2 + $0x28] sm:$0xff] %vm832, %v821
          %839 = vst.msk [vmem:[#allocation2 + $0x30] sm:$0xff] %vm832, %v822
          %840 = vst.msk [vmem:[#allocation2 + $0x38] sm:$0xff] %vm832, %v823
          %841 = vst.msk [vmem:[#allocation2 + $0x40] sm:$0xff] %vm832, %v824
          %842 = vst.msk [vmem:[#allocation2 + $0x48] sm:$0xff] %vm832, %v825
          %843 = vst.msk [vmem:[#allocation2 + $0x50] sm:$0xff] %vm832, %v826
          %844 = vst.msk [vmem:[#allocation2 + $0x58] sm:$0xff] %vm832, %v827
          %845 = vst.msk [vmem:[#allocation2 + $0x60] sm:$0xff] %vm832, %v828
          %846 = vst.msk [vmem:[#allocation2 + $0x68] sm:$0xff] %vm832, %v829
          %847 = vst.msk [vmem:[#allocation2 + $0x70] sm:$0xff] %vm832, %v830
          %848 = vst.msk [vmem:[#allocation2 + $0x78] sm:$0xff] %vm832, %v831
        $region68: #{tpu_custom_call.1} parent=47 // pred_fallthru
          _
        %v849 = vld [vmem:[#allocation2] sm:$0xff]
        %v850 = vld [vmem:[#allocation2 + $0x8] sm:$0xff]
        %v851 = vld [vmem:[#allocation2 + $0x10] sm:$0xff]
        %v852 = vld [vmem:[#allocation2 + $0x18] sm:$0xff]
        %v853 = vld [vmem:[#allocation2 + $0x20] sm:$0xff]
        %v854 = vld [vmem:[#allocation2 + $0x28] sm:$0xff]
        %v855 = vld [vmem:[#allocation2 + $0x30] sm:$0xff]
        %v856 = vld [vmem:[#allocation2 + $0x38] sm:$0xff]
        %v857 = vld [vmem:[#allocation2 + $0x40] sm:$0xff]
        %v858 = vld [vmem:[#allocation2 + $0x48] sm:$0xff]
        %v859 = vld [vmem:[#allocation2 + $0x50] sm:$0xff]
        %v860 = vld [vmem:[#allocation2 + $0x58] sm:$0xff]
        %v861 = vld [vmem:[#allocation2 + $0x60] sm:$0xff]
        %v862 = vld [vmem:[#allocation2 + $0x68] sm:$0xff]
        %v863 = vld [vmem:[#allocation2 + $0x70] sm:$0xff]
        %v864 = vld [vmem:[#allocation2 + $0x78] sm:$0xff]
        %v865 = vld [vmem:[%s435] sm:$0xf]
        %v866 = vld [vmem:[%s435 + $0x4] sm:$0xf]
        %v867 = vld [vmem:[%s435 + $0x8] sm:$0xf]
        %v868 = vld [vmem:[%s435 + $0xc] sm:$0xf]
        %v869 = vld [vmem:[%s438] sm:$0x1]
        %v871 = vlaneseq
        %v872 = vshrl.u32 %v871, 7
        %v873 = vsub.s32 0, %v872
        %v874 = vrot.slane %v869, %v873
        %v880 = vunpack.c.l.b16 %v865
        %v881 = vunpack.c.l.b16 %v866
        %v882 = vunpack.c.l.b16 %v867
        %v883 = vunpack.c.l.b16 %v868
        %v884 = vpack.c.b16 %v881, %v880
        %v885 = vpack.c.b16 %v883, %v882
        %vm888 = vcmask 261120
        %v890 = vsel %vm888, %v849, 0
        %v893 = vsel %vm888, %v850, 0
        %v896 = vsel %vm888, %v851, 0
        %v899 = vsel %vm888, %v852, 0
        %v902 = vsel %vm888, %v853, 0
        %v905 = vsel %vm888, %v854, 0
        %v908 = vsel %vm888, %v855, 0
        %v911 = vsel %vm888, %v856, 0
        %v914 = vsel %vm888, %v857, 0
        %v917 = vsel %vm888, %v858, 0
        %v920 = vsel %vm888, %v859, 0
        %v923 = vsel %vm888, %v860, 0
        %v926 = vsel %vm888, %v861, 0
        %v929 = vsel %vm888, %v862, 0
        %v932 = vsel %vm888, %v863, 0
        %v935 = vsel %vm888, %v864, 0
        %937 = vmatprep.subr.bf16.mxu0 0
        %938 = vmatpush1.bf16.msra.mxu0 %v884
        %939 = vmatprep.subr.bf16.mxu0 0
        %940 = vmatpush1.bf16.msra.mxu0 %v885
        %941 = vmatprep.subr.bf16.mxu0 0
        %942 = vmatpush1.bf16.msra.mxu0 0
        %943 = vmatprep.subr.bf16.mxu0 0
        %944 = vmatpush1.bf16.msra.mxu0 0
        %945 = vmatprep.subr.bf16.mxu0 0
        %946 = vmatpush1.bf16.msra.mxu0 0
        %947 = vmatprep.subr.bf16.mxu0 0
        %948 = vmatpush1.bf16.msra.mxu0 0
        %949 = vmatprep.subr.bf16.mxu0 0
        %950 = vmatpush1.bf16.msra.mxu0 0
        %951 = vmatprep.subr.bf16.mxu0 0
        %952 = vmatpush1.bf16.msra.mxu0 0
        %953 = vmatprep.subr.bf16.mxu0 0
        %954 = vmatpush1.bf16.msra.mxu0 0
        %955 = vmatprep.subr.bf16.mxu0 0
        %956 = vmatpush1.bf16.msra.mxu0 0
        %957 = vmatprep.subr.bf16.mxu0 0
        %958 = vmatpush1.bf16.msra.mxu0 0
        %959 = vmatprep.subr.bf16.mxu0 0
        %960 = vmatpush1.bf16.msra.mxu0 0
        %961 = vmatprep.subr.bf16.mxu0 0
        %962 = vmatpush1.bf16.msra.mxu0 0
        %963 = vmatprep.subr.bf16.mxu0 0
        %964 = vmatpush1.bf16.msra.mxu0 0
        %965 = vmatprep.subr.bf16.mxu0 0
        %966 = vmatpush1.bf16.msra.mxu0 0
        %967 = vmatprep.subr.bf16.mxu0 0
        %968 = vmatpush1.bf16.msra.mxu0 0
        %969 = vmatprep.mubr.bf16.mxu0 0
        %970 = vmatmul.mubr.bf16.gmra.mrb[0].mxu0 %v890
        %v971 = vpop.f32.mrb[0].mxu0
        %v972 = vadd.f32 %v874, %v971
        %v973 = vpop.f32.mrb[0].mxu0
        %v974 = vpop.f32.mrb[0].mxu0
        %v975 = vadd.f32 %v874, %v974
        %v976 = vpop.f32.mrb[0].mxu0
        %977 = vmatprep.mubr.bf16.mxu0 0
        %978 = vmatmul.mubr.bf16.gmra.mrb[0].mxu0 %v893
        %v979 = vpop.f32.mrb[0].mxu0
        %v980 = vadd.f32 %v874, %v979
        %v981 = vpop.f32.mrb[0].mxu0
        %v982 = vpop.f32.mrb[0].mxu0
        %v983 = vadd.f32 %v874, %v982
        %v984 = vpop.f32.mrb[0].mxu0
        %985 = vmatprep.mubr.bf16.mxu0 0
        %986 = vmatmul.mubr.bf16.gmra.mrb[0].mxu0 %v896
        %v987 = vpop.f32.mrb[0].mxu0
        %v988 = vadd.f32 %v874, %v987
        %v989 = vpop.f32.mrb[0].mxu0
        %v990 = vpop.f32.mrb[0].mxu0
        %v991 = vadd.f32 %v874, %v990
        %v992 = vpop.f32.mrb[0].mxu0
        %993 = vmatprep.mubr.bf16.mxu0 0
        %994 = vmatmul.mubr.bf16.gmra.mrb[0].mxu0 %v899
        %v995 = vpop.f32.mrb[0].mxu0
        %v996 = vadd.f32 %v874, %v995
        %v997 = vpop.f32.mrb[0].mxu0
        %v998 = vpop.f32.mrb[0].mxu0
        %v999 = vadd.f32 %v874, %v998
        %v1000 = vpop.f32.mrb[0].mxu0
        %1001 = vmatprep.mubr.bf16.mxu0 0
        %1002 = vmatmul.mubr.bf16.gmra.mrb[0].mxu0 %v902
        %v1003 = vpop.f32.mrb[0].mxu0
        %v1004 = vadd.f32 %v874, %v1003
        %v1005 = vpop.f32.mrb[0].mxu0
        %v1006 = vpop.f32.mrb[0].mxu0
        %v1007 = vadd.f32 %v874, %v1006
        %v1008 = vpop.f32.mrb[0].mxu0
        %1009 = vmatprep.mubr.bf16.mxu0 0
        %1010 = vmatmul.mubr.bf16.gmra.mrb[0].mxu0 %v905
        %v1011 = vpop.f32.mrb[0].mxu0
        %v1012 = vadd.f32 %v874, %v1011
        %v1013 = vpop.f32.mrb[0].mxu0
        %v1014 = vpop.f32.mrb[0].mxu0
        %v1015 = vadd.f32 %v874, %v1014
        %v1016 = vpop.f32.mrb[0].mxu0
        %1017 = vmatprep.mubr.bf16.mxu0 0
        %1018 = vmatmul.mubr.bf16.gmra.mrb[0].mxu0 %v908
        %v1019 = vpop.f32.mrb[0].mxu0
        %v1020 = vadd.f32 %v874, %v1019
        %v1021 = vpop.f32.mrb[0].mxu0
        %v1022 = vpop.f32.mrb[0].mxu0
        %v1023 = vadd.f32 %v874, %v1022
        %v1024 = vpop.f32.mrb[0].mxu0
        %1025 = vmatprep.mubr.bf16.mxu0 0
        %1026 = vmatmul.mubr.bf16.gmra.mrb[0].mxu0 %v911
        %v1027 = vpop.f32.mrb[0].mxu0
        %v1028 = vadd.f32 %v874, %v1027
        %v1029 = vpop.f32.mrb[0].mxu0
        %v1030 = vpop.f32.mrb[0].mxu0
        %v1031 = vadd.f32 %v874, %v1030
        %v1032 = vpop.f32.mrb[0].mxu0
        %1033 = vmatprep.mubr.bf16.mxu0 0
        %1034 = vmatmul.mubr.bf16.gmra.mrb[0].mxu0 %v914
        %v1035 = vpop.f32.mrb[0].mxu0
        %v1036 = vadd.f32 %v874, %v1035
        %v1037 = vpop.f32.mrb[0].mxu0
        %v1038 = vpop.f32.mrb[0].mxu0
        %v1039 = vadd.f32 %v874, %v1038
        %v1040 = vpop.f32.mrb[0].mxu0
        %1041 = vmatprep.mubr.bf16.mxu0 0
        %1042 = vmatmul.mubr.bf16.gmra.mrb[0].mxu0 %v917
        %v1043 = vpop.f32.mrb[0].mxu0
        %v1044 = vadd.f32 %v874, %v1043
        %v1045 = vpop.f32.mrb[0].mxu0
        %v1046 = vpop.f32.mrb[0].mxu0
        %v1047 = vadd.f32 %v874, %v1046
        %v1048 = vpop.f32.mrb[0].mxu0
        %1049 = vmatprep.mubr.bf16.mxu0 0
        %1050 = vmatmul.mubr.bf16.gmra.mrb[0].mxu0 %v920
        %v1051 = vpop.f32.mrb[0].mxu0
        %v1052 = vadd.f32 %v874, %v1051
        %v1053 = vpop.f32.mrb[0].mxu0
        %v1054 = vpop.f32.mrb[0].mxu0
        %v1055 = vadd.f32 %v874, %v1054
        %v1056 = vpop.f32.mrb[0].mxu0
        %1057 = vmatprep.mubr.bf16.mxu0 0
        %1058 = vmatmul.mubr.bf16.gmra.mrb[0].mxu0 %v923
        %v1059 = vpop.f32.mrb[0].mxu0
        %v1060 = vadd.f32 %v874, %v1059
        %v1061 = vpop.f32.mrb[0].mxu0
        %v1062 = vpop.f32.mrb[0].mxu0
        %v1063 = vadd.f32 %v874, %v1062
        %v1064 = vpop.f32.mrb[0].mxu0
        %1065 = vmatprep.mubr.bf16.mxu0 0
        %1066 = vmatmul.mubr.bf16.gmra.mrb[0].mxu0 %v926
        %v1067 = vpop.f32.mrb[0].mxu0
        %v1068 = vadd.f32 %v874, %v1067
        %v1069 = vpop.f32.mrb[0].mxu0
        %v1070 = vpop.f32.mrb[0].mxu0
        %v1071 = vadd.f32 %v874, %v1070
        %v1072 = vpop.f32.mrb[0].mxu0
        %1073 = vmatprep.mubr.bf16.mxu0 0
        %1074 = vmatmul.mubr.bf16.gmra.mrb[0].mxu0 %v929
        %v1075 = vpop.f32.mrb[0].mxu0
        %v1076 = vadd.f32 %v874, %v1075
        %v1077 = vpop.f32.mrb[0].mxu0
        %v1078 = vpop.f32.mrb[0].mxu0
        %v1079 = vadd.f32 %v874, %v1078
        %v1080 = vpop.f32.mrb[0].mxu0
        %1081 = vmatprep.mubr.bf16.mxu0 0
        %1082 = vmatmul.mubr.bf16.gmra.mrb[0].mxu0 %v932
        %v1083 = vpop.f32.mrb[0].mxu0
        %v1084 = vadd.f32 %v874, %v1083
        %v1085 = vpop.f32.mrb[0].mxu0
        %v1086 = vpop.f32.mrb[0].mxu0
        %v1087 = vadd.f32 %v874, %v1086
        %v1088 = vpop.f32.mrb[0].mxu0
        %1089 = vmatprep.mubr.bf16.mxu0 0
        %1090 = vmatmul.mubr.bf16.gmra.mrb[0].mxu0 %v935
        %v1091 = vpop.f32.mrb[0].mxu0
        %v1092 = vadd.f32 %v874, %v1091
        %v1093 = vpop.f32.mrb[0].mxu0
        %v1094 = vpop.f32.mrb[0].mxu0
        %v1095 = vadd.f32 %v874, %v1094
        %v1096 = vpop.f32.mrb[0].mxu0
        %1097 = vdwg.mxu0
        %v1098 = vpack.c.bf16 %v975, %v972
        %v1099 = vpack.c.bf16 %v983, %v980
        %v1100 = vpack.c.bf16 %v991, %v988
        %v1101 = vpack.c.bf16 %v999, %v996
        %v1102 = vpack.c.bf16 %v1007, %v1004
        %v1103 = vpack.c.bf16 %v1015, %v1012
        %v1104 = vpack.c.bf16 %v1023, %v1020
        %v1105 = vpack.c.bf16 %v1031, %v1028
        %v1106 = vpack.c.bf16 %v1039, %v1036
        %v1107 = vpack.c.bf16 %v1047, %v1044
        %v1108 = vpack.c.bf16 %v1055, %v1052
        %v1109 = vpack.c.bf16 %v1063, %v1060
        %v1110 = vpack.c.bf16 %v1071, %v1068
        %v1111 = vpack.c.bf16 %v1079, %v1076
        %v1112 = vpack.c.bf16 %v1087, %v1084
        %v1113 = vpack.c.bf16 %v1095, %v1092
        %v1130 = vunpack.c.l.b16 %v1098
        %v1131 = vunpack.c.h.b16 %v1098
        %v1132 = vunpack.c.l.b16 %v1099
        %v1133 = vunpack.c.h.b16 %v1099
        %v1134 = vunpack.c.l.b16 %v1100
        %v1135 = vunpack.c.h.b16 %v1100
        %v1136 = vunpack.c.l.b16 %v1101
        %v1137 = vunpack.c.h.b16 %v1101
        %v1138 = vunpack.c.l.b16 %v1102
        %v1139 = vunpack.c.h.b16 %v1102
        %v1140 = vunpack.c.l.b16 %v1103
        %v1141 = vunpack.c.h.b16 %v1103
        %v1142 = vunpack.c.l.b16 %v1104
        %v1143 = vunpack.c.h.b16 %v1104
        %v1144 = vunpack.c.l.b16 %v1105
        %v1145 = vunpack.c.h.b16 %v1105
        %v1146 = vunpack.c.l.b16 %v1106
        %v1147 = vunpack.c.h.b16 %v1106
        %v1148 = vunpack.c.l.b16 %v1107
        %v1149 = vunpack.c.h.b16 %v1107
        %v1150 = vunpack.c.l.b16 %v1108
        %v1151 = vunpack.c.h.b16 %v1108
        %v1152 = vunpack.c.l.b16 %v1109
        %v1153 = vunpack.c.h.b16 %v1109
        %v1154 = vunpack.c.l.b16 %v1110
        %v1155 = vunpack.c.h.b16 %v1110
        %v1156 = vunpack.c.l.b16 %v1111
        %v1157 = vunpack.c.h.b16 %v1111
        %v1158 = vunpack.c.l.b16 %v1112
        %v1159 = vunpack.c.h.b16 %v1112
        %v1160 = vunpack.c.l.b16 %v1113
        %v1161 = vunpack.c.h.b16 %v1113
        %v1162 = vpack.c.b16 %v1130, %v1130
        %v1163 = vpack.c.b16 %v1131, %v1131
        %v1164 = vpack.c.b16 %v1132, %v1132
        %v1165 = vpack.c.b16 %v1133, %v1133
        %v1166 = vpack.c.b16 %v1134, %v1134
        %v1167 = vpack.c.b16 %v1135, %v1135
        %v1168 = vpack.c.b16 %v1136, %v1136
        %v1169 = vpack.c.b16 %v1137, %v1137
        %v1170 = vpack.c.b16 %v1138, %v1138
        %v1171 = vpack.c.b16 %v1139, %v1139
        %v1172 = vpack.c.b16 %v1140, %v1140
        %v1173 = vpack.c.b16 %v1141, %v1141
        %v1174 = vpack.c.b16 %v1142, %v1142
        %v1175 = vpack.c.b16 %v1143, %v1143
        %v1176 = vpack.c.b16 %v1144, %v1144
        %v1177 = vpack.c.b16 %v1145, %v1145
        %v1178 = vpack.c.b16 %v1146, %v1146
        %v1179 = vpack.c.b16 %v1147, %v1147
        %v1180 = vpack.c.b16 %v1148, %v1148
        %v1181 = vpack.c.b16 %v1149, %v1149
        %v1182 = vpack.c.b16 %v1150, %v1150
        %v1183 = vpack.c.b16 %v1151, %v1151
        %v1184 = vpack.c.b16 %v1152, %v1152
        %v1185 = vpack.c.b16 %v1153, %v1153
        %v1186 = vpack.c.b16 %v1154, %v1154
        %v1187 = vpack.c.b16 %v1155, %v1155
        %v1188 = vpack.c.b16 %v1156, %v1156
        %v1189 = vpack.c.b16 %v1157, %v1157
        %v1190 = vpack.c.b16 %v1158, %v1158
        %v1191 = vpack.c.b16 %v1159, %v1159
        %v1192 = vpack.c.b16 %v1160, %v1160
        %v1193 = vpack.c.b16 %v1161, %v1161
        %1226 = vst [vmem:[%s429] sm:$0xf] %v1162
        %1227 = vst [vmem:[%s429 + $0x4] sm:$0xf] %v1163
        %1228 = vst [vmem:[%s429 + $0x8] sm:$0xf] %v1164
        %1229 = vst [vmem:[%s429 + $0xc] sm:$0xf] %v1165
        %1230 = vst [vmem:[%s429 + $0x10] sm:$0xf] %v1166
        %1231 = vst [vmem:[%s429 + $0x14] sm:$0xf] %v1167
        %1232 = vst [vmem:[%s429 + $0x18] sm:$0xf] %v1168
        %1233 = vst [vmem:[%s429 + $0x1c] sm:$0xf] %v1169
        %1234 = vst [vmem:[%s429 + $0x20] sm:$0xf] %v1170
        %1235 = vst [vmem:[%s429 + $0x24] sm:$0xf] %v1171
        %1236 = vst [vmem:[%s429 + $0x28] sm:$0xf] %v1172
        %1237 = vst [vmem:[%s429 + $0x2c] sm:$0xf] %v1173
        %1238 = vst [vmem:[%s429 + $0x30] sm:$0xf] %v1174
        %1239 = vst [vmem:[%s429 + $0x34] sm:$0xf] %v1175
        %1240 = vst [vmem:[%s429 + $0x38] sm:$0xf] %v1176
        %1241 = vst [vmem:[%s429 + $0x3c] sm:$0xf] %v1177
        %1242 = vst [vmem:[%s429 + $0x40] sm:$0xf] %v1178
        %1243 = vst [vmem:[%s429 + $0x44] sm:$0xf] %v1179
        %1244 = vst [vmem:[%s429 + $0x48] sm:$0xf] %v1180
        %1245 = vst [vmem:[%s429 + $0x4c] sm:$0xf] %v1181
        %1246 = vst [vmem:[%s429 + $0x50] sm:$0xf] %v1182
        %1247 = vst [vmem:[%s429 + $0x54] sm:$0xf] %v1183
        %1248 = vst [vmem:[%s429 + $0x58] sm:$0xf] %v1184
        %1249 = vst [vmem:[%s429 + $0x5c] sm:$0xf] %v1185
        %1250 = vst [vmem:[%s429 + $0x60] sm:$0xf] %v1186
        %1251 = vst [vmem:[%s429 + $0x64] sm:$0xf] %v1187
        %1252 = vst [vmem:[%s429 + $0x68] sm:$0xf] %v1188
        %1253 = vst [vmem:[%s429 + $0x6c] sm:$0xf] %v1189
        %1254 = vst [vmem:[%s429 + $0x70] sm:$0xf] %v1190
        %1255 = vst [vmem:[%s429 + $0x74] sm:$0xf] %v1191
        %1256 = vst [vmem:[%s429 + $0x78] sm:$0xf] %v1192
        %1257 = vst [vmem:[%s429 + $0x7c] sm:$0xf] %v1193
        %s1258 = sand.u32 %s239, 1
        %s1259 = scalar_lea.sflag [#allocation5], %s1258
        %s1260 = sand.u32 %s239, 1
        %s1261 = smul.addr %s1260, 128
        %s1262 = scalar_lea.vmem [#allocation11], %s1261
        // Predicated region
        $region69: #{tpu_custom_call.1} parent=47 // pred_check
          %p1263 = pneg %p249
        $region70: #{tpu_custom_call.1} parent=47 // pred_check_branch
          %1265 = sbr.rel (%p1263) target = $region72
        $region71: #{tpu_custom_call.1} parent=47 // pred_region
          %s1266 = smul.u32 16, %s35
          %s1267 = smul.u32 2, %s36
          %s1269 = ssub.s32 2048, 2048
          %1270 = vsyncadd %s1259, %s1269
          %s1271 = sadd.s32 %s37, %s1267
          %s1272 = smul.addr %s1266, 2
          %s1273 = sadd.s32 %s1271, %s1272
          %s1274 = smul.addr %s34, 32
          %s1275 = sadd.s32 %s1273, %s1274
          %s1276 = smul.addr %s1275, 64
          %s1277 = scalar_lea.hbm %s7, %s1276
          %s1278 = sshll.u32 %s1262, 4
          %s1279 = int_to_ptr.vmem [resolvable:$true] %s1278
          %1284 = dma.vmem_to_hbm [thread:$0]  %s1279, 2048, %s1277, %s1259, 64, 64, 4
        $region72: #{tpu_custom_call.1} parent=47 // pred_fallthru
          _
      $region48: #{tpu_custom_call.1} parent=5 // pred_fallthru
        _
      %p1285 = scmp.le.s32.totalorder 2, %s23
      // Predicated region
      $region73: #{tpu_custom_call.1} parent=5 // pred_check
        %p1286 = pneg %p1285
      $region74: #{tpu_custom_call.1} parent=5 // pred_check_branch
        %1288 = sbr.rel (%p1286) target = $region76
      $region75: #{tpu_custom_call.1} parent=5 // pred_region
        %s1289 = ssub.s32 %s23, 2
        // Predicated region
        $region77: #{tpu_custom_call.1} parent=75 // pred_check
          %p1290 = pneg %p255
        $region78: #{tpu_custom_call.1} parent=75 // pred_check_branch
          %1292 = sbr.rel (%p1290) target = $region80
        $region79: #{tpu_custom_call.1} parent=75 // pred_region
          %s1293 = sand.u32 %s240, 1
          %s1294 = scalar_lea.sflag [#allocation5], %s1293
          %s1295 = sand.u32 %s240, 1
          %s1296 = smul.addr %s1295, 128
          %s1297 = scalar_lea.vmem [#allocation11], %s1296
          %1298 = dma.done %s1294, 2048
        $region80: #{tpu_custom_call.1} parent=75 // pred_fallthru
          _
      $region76: #{tpu_custom_call.1} parent=5 // pred_fallthru
        _
    $region6: #{tpu_custom_call.1} parent=1 // loop_footer
      %s27 = sadd.s32 1, %s23
    $region7: #{tpu_custom_call.1} parent=1 // loop_footer_branch
      %22 = sbr.rel target = $region3
    $region8: #{tpu_custom_call.1} parent=1 // loop_exit
      _
    %1299 = vsyncpa [#allocation4], 1
    %s1300 = scalar_lea.sflag [#allocation4], 1
    %1301 = vsyncpa %s1300, 1
    %1302 = vsyncpa [#allocation7], 1
    %s1303 = scalar_lea.sflag [#allocation7], 1
    %1304 = vsyncpa %s1303, 1
    %1305 = vsyncpa [#allocation10], 1
    %1306 = vsyncpa [#allocation5], 1
    %s1307 = scalar_lea.sflag [#allocation5], 1
    %1308 = vsyncpa %s1307, 1

// kernel: tpu_custom_call.1
$region0: #{tpu_custom_call.1}
  #allocation0 [shape = 'u32[]', space=smem, size = 0x4, offset = 0x4, fixed_abs, tag = 'smem constant byte address 0x4 - core index']
  #allocation1 [shape = 'u32[144,128]{1,0:T(1,128)}', space=vmem, size = 0x12000, scoped, tag = 'internal scratch']
  #allocation2 [shape = 'bf16[256,32]{1,0:T(16,128)(2,1)}', space=vmem, size = 0x10000, scoped, tag = 'scratch operand']
  %s0 = inlined_call_operand.hbm [shape: bf16[2,16,16], index: 0, kind: input, shape index: {}]
  %s1 = inlined_call_operand.hbm [shape: bf16[2,16,16], index: 1, kind: input, shape index: {}]
  %s2 = inlined_call_operand.hbm [shape: bf16[16,32], index: 2, kind: input, shape index: {}]
  %s3 = inlined_call_operand.hbm [shape: bf16[16,32], index: 3, kind: input, shape index: {}]
  %s4 = inlined_call_operand.vmem [shape: f32[1,32], index: 4, kind: input, shape index: {}]
  %s5 = inlined_call_operand.vmem [shape: bf16[32,128], index: 5, kind: input, shape index: {}]
  %s6 = inlined_call_operand.vmem [shape: f32[1,128], index: 6, kind: input, shape index: {}]
  %s7 = inlined_call_operand.hbm [shape: bf16[2,16,16,128], index: 7, kind: output, shape index: {}]
  %s8 = sld [smem:[#allocation0]]
  $region81: #{tpu_custom_call.1} parent=0
    _
  %s10 = ssub.s32 1, %s8
  %s11 = scalar_select 0, %s10, %s8
  $region1: #{tpu_custom_call.1} parent=0
    #allocation3 [shape = 'u8[8192]{0}', space=vmem, size = 0x2000, scoped, tag = 'input window, operand 0']
    #allocation4 [shape = 's32[2]{0}', space=sflag, size = 0x8, scoped, tag = 'scoped memory for tpu_custom_call.1']
    #allocation5 [shape = 's32[2]{0}', space=sflag, size = 0x8, scoped, tag = 'scoped memory for tpu_custom_call.1']
    #allocation6 [shape = 'u8[8192]{0}', space=vmem, size = 0x2000, scoped, tag = 'input window, operand 1']
    #allocation7 [shape = 's32[2]{0}', space=sflag, size = 0x8, scoped, tag = 'scoped memory for tpu_custom_call.1']
    #allocation8 [shape = 'u8[4096]{0}', space=vmem, size = 0x1000, scoped, tag = 'input window, operand 2, single buffered']
    #allocation9 [shape = 'u8[4096]{0}', space=vmem, size = 0x1000, scoped, tag = 'input window, operand 3, single buffered']
    #allocation10 [shape = 's32[1]{0}', space=sflag, size = 0x4, scoped, tag = 'scoped memory for tpu_custom_call.1']
    #allocation11 [shape = 'u8[131072]{0}', space=vmem, size = 0x20000, scoped, tag = 'output window, operand 0']
    %12 = vsyncpa [#allocation4], 0
    %s13 = scalar_lea.sflag [#allocation4], 1
    %14 = vsyncpa %s13, 0
    %15 = vsyncpa [#allocation7], 0
    %s16 = scalar_lea.sflag [#allocation7], 1
    %17 = vsyncpa %s16, 0
    %18 = vsyncpa [#allocation10], 0
    %19 = vsyncpa [#allocation5], 0
    %s20 = scalar_lea.sflag [#allocation5], 1
    %21 = vsyncpa %s20, 0
    loop: start=0, step=1, limit=4
    $region2: #{tpu_custom_call.1} parent=1 // loop_pre_header
      _
    $region3: #{tpu_custom_call.1} parent=1 // loop_header
      %s23 = sphi 0, %s27
      %p24 = scmp.ge.s32.totalorder %s23, 4
      %s30 = sphi 0, %s56
      %s31 = sphi 0, %s52
      %s32 = sphi 0, %s48
      %s33 = sphi 0, %s44
      %s34 = sphi 0, %s30
      %s35 = sphi 0, %s31
      %s36 = sphi 0, %s32
      %s37 = sphi 0, %s33
      %s38 = sphi 0, %s34
      %s39 = sphi 0, %s35
      %s40 = sphi 0, %s36
      %s41 = sphi 0, %s37
      %s61 = sphi 0, %s63
      %s64 = sphi 0, %s61
      %s65 = sphi 0, %s64
      %s81 = sphi 0, %s65
      %s89 = sphi 0, %s91
      %s92 = sphi 0, %s89
      %s93 = sphi 0, %s92
      %s109 = sphi 0, %s93
      %s113 = sphi 0, %s113
      %s115 = sphi 0, %s113
      %s116 = sphi 0, %s115
      %s130 = sphi 0, %s116
      %s134 = sphi 0, %s134
      %s136 = sphi 0, %s134
      %s137 = sphi 0, %s136
      %s151 = sphi 0, %s137
      %s155 = sphi 0, %s155
      %s157 = sphi 0, %s155
      %s158 = sphi 0, %s157
      %s172 = sphi 0, %s158
      %s178 = sphi 0, %s180
      %s181 = sphi 0, %s178
      %s182 = sphi 0, %s181
      %s198 = sphi 0, %s182
      %s204 = sphi 0, %s206
      %s207 = sphi 0, %s204
      %s208 = sphi 0, %s207
      %s224 = sphi 0, %s208
      %s236 = sphi 0, %s238
      %s239 = sphi 0, %s236
      %s240 = sphi 0, %s239
      %s256 = sphi 0, %s240
    $region4: #{tpu_custom_call.1} parent=1 // loop_header_branch
      %26 = sbr.rel (%p24) target = $region8
    $region5: #{tpu_custom_call.1} parent=1 // loop_body
      %s28 = ssub.s32 %s23, 1
      %s29 = ssub.s32 %s23, 2
      %s42 = sadd.s32 1, %s33
      %p43 = scmp.ge.s32.totalorder %s42, 1
      %s44 = scalar_select %p43, 0, %s42
      %s45 = sadd.s32 1, %s32
      %s46 = scalar_select %p43, %s45, %s32
      %p47 = scmp.ge.s32.totalorder %s46, 1
      %s48 = scalar_select %p47, 0, %s46
      %s49 = sadd.s32 1, %s31
      %s50 = scalar_select %p47, %s49, %s31
      %p51 = scmp.ge.s32.totalorder %s50, 1
      %s52 = scalar_select %p51, 0, %s50
      %s53 = sadd.s32 1, %s30
      %s54 = scalar_select %p51, %s53, %s30
      %p55 = scmp.ge.s32.totalorder %s54, 2
      %s56 = scalar_select %p55, 0, %s54
      %s57 = ssub.s32 %s30, %s56
      %s58 = ssub.s32 %s31, %s52
      %s59 = sor.u32 %s57, %s58
      %p60 = scmp.eq.s32.totalorder %s59, 0
      %s62 = sadd.s32 %s61, 1
      %s63 = scalar_select %p60, %s61, %s62
      %p66 = pneg %p60
      %p67 = scmp.eq.s32.totalorder %s23, 1
      %p68 = por %p66, %p67
      %p69 = scmp.ne.s32.totalorder %s61, %s64
      %p70 = scmp.eq.s32.totalorder %s23, 0
      %p71 = por %p69, %p70
      %p72 = scmp.ne.s32.totalorder %s61, %s64
      %p73 = scmp.eq.s32.totalorder %s28, 1
      %p74 = por %p72, %p73
      %p75 = scmp.ne.s32.totalorder %s64, %s65
      %p76 = scmp.eq.s32.totalorder %s28, 0
      %p77 = por %p75, %p76
      %p78 = scmp.ne.s32.totalorder %s64, %s65
      %p79 = scmp.eq.s32.totalorder %s29, 1
      %p80 = por %p78, %p79
      %p82 = scmp.ne.s32.totalorder %s65, %s81
      %p83 = scmp.eq.s32.totalorder %s29, 0
      %p84 = por %p82, %p83
      %s85 = ssub.s32 %s30, %s56
      %s86 = ssub.s32 %s32, %s48
      %s87 = sor.u32 %s85, %s86
      %p88 = scmp.eq.s32.totalorder %s87, 0
      %s90 = sadd.s32 %s89, 1
      %s91 = scalar_select %p88, %s89, %s90
      %p94 = pneg %p88
      %p95 = scmp.eq.s32.totalorder %s23, 1
      %p96 = por %p94, %p95
      %p97 = scmp.ne.s32.totalorder %s89, %s92
      %p98 = scmp.eq.s32.totalorder %s23, 0
      %p99 = por %p97, %p98
      %p100 = scmp.ne.s32.totalorder %s89, %s92
      %p101 = scmp.eq.s32.totalorder %s28, 1
      %p102 = por %p100, %p101
      %p103 = scmp.ne.s32.totalorder %s92, %s93
      %p104 = scmp.eq.s32.totalorder %s28, 0
      %p105 = por %p103, %p104
      %p106 = scmp.ne.s32.totalorder %s92, %s93
      %p107 = scmp.eq.s32.totalorder %s29, 1
      %p108 = por %p106, %p107
      %p110 = scmp.ne.s32.totalorder %s93, %s109
      %p111 = scmp.eq.s32.totalorder %s29, 0
      %p112 = por %p110, %p111
      %s114 = sadd.s32 %s113, 1
      %p117 = scmp.eq.s32.totalorder %s23, 1
      %p118 = scmp.ne.s32.totalorder %s113, %s115
      %p119 = scmp.eq.s32.totalorder %s23, 0
      %p120 = por %p118, %p119
      %p121 = scmp.ne.s32.totalorder %s113, %s115
      %p122 = scmp.eq.s32.totalorder %s28, 1
      %p123 = por %p121, %p122
      %p124 = scmp.ne.s32.totalorder %s115, %s116
      %p125 = scmp.eq.s32.totalorder %s28, 0
      %p126 = por %p124, %p125
      %p127 = scmp.ne.s32.totalorder %s115, %s116
      %p128 = scmp.eq.s32.totalorder %s29, 1
      %p129 = por %p127, %p128
      %p131 = scmp.ne.s32.totalorder %s116, %s130
      %p132 = scmp.eq.s32.totalorder %s29, 0
      %p133 = por %p131, %p132
      %s135 = sadd.s32 %s134, 1
      %p138 = scmp.eq.s32.totalorder %s23, 1
      %p139 = scmp.ne.s32.totalorder %s134, %s136
      %p140 = scmp.eq.s32.totalorder %s23, 0
      %p141 = por %p139, %p140
      %p142 = scmp.ne.s32.totalorder %s134, %s136
      %p143 = scmp.eq.s32.totalorder %s28, 1
      %p144 = por %p142, %p143
      %p145 = scmp.ne.s32.totalorder %s136, %s137
      %p146 = scmp.eq.s32.totalorder %s28, 0
      %p147 = por %p145, %p146
      %p148 = scmp.ne.s32.totalorder %s136, %s137
      %p149 = scmp.eq.s32.totalorder %s29, 1
      %p150 = por %p148, %p149
      %p152 = scmp.ne.s32.totalorder %s137, %s151
      %p153 = scmp.eq.s32.totalorder %s29, 0
      %p154 = por %p152, %p153
      %s156 = sadd.s32 %s155, 1
      %p159 = scmp.eq.s32.totalorder %s23, 1
      %p160 = scmp.ne.s32.totalorder %s155, %s157
      %p161 = scmp.eq.s32.totalorder %s23, 0
      %p162 = por %p160, %p161
      %p163 = scmp.ne.s32.totalorder %s155, %s157
      %p164 = scmp.eq.s32.totalorder %s28, 1
      %p165 = por %p163, %p164
      %p166 = scmp.ne.s32.totalorder %s157, %s158
      %p167 = scmp.eq.s32.totalorder %s28, 0
      %p168 = por %p166, %p167
      %p169 = scmp.ne.s32.totalorder %s157, %s158
      %p170 = scmp.eq.s32.totalorder %s29, 1
      %p171 = por %p169, %p170
      %p173 = scmp.ne.s32.totalorder %s158, %s172
      %p174 = scmp.eq.s32.totalorder %s29, 0
      %p175 = por %p173, %p174
      %s176 = ssub.s32 %s33, %s44
      %p177 = scmp.eq.s32.totalorder %s176, 0
      %s179 = sadd.s32 %s178, 1
      %s180 = scalar_select %p177, %s178, %s179
      %p183 = pneg %p177
      %p184 = scmp.eq.s32.totalorder %s23, 1
      %p185 = por %p183, %p184
      %p186 = scmp.ne.s32.totalorder %s178, %s181
      %p187 = scmp.eq.s32.totalorder %s23, 0
      %p188 = por %p186, %p187
      %p189 = scmp.ne.s32.totalorder %s178, %s181
      %p190 = scmp.eq.s32.totalorder %s28, 1
      %p191 = por %p189, %p190
      %p192 = scmp.ne.s32.totalorder %s181, %s182
      %p193 = scmp.eq.s32.totalorder %s28, 0
      %p194 = por %p192, %p193
      %p195 = scmp.ne.s32.totalorder %s181, %s182
      %p196 = scmp.eq.s32.totalorder %s29, 1
      %p197 = por %p195, %p196
      %p199 = scmp.ne.s32.totalorder %s182, %s198
      %p200 = scmp.eq.s32.totalorder %s29, 0
      %p201 = por %p199, %p200
      %s202 = ssub.s32 %s33, %s44
      %p203 = scmp.eq.s32.totalorder %s202, 0
      %s205 = sadd.s32 %s204, 1
      %s206 = scalar_select %p203, %s204, %s205
      %p209 = pneg %p203
      %p210 = scmp.eq.s32.totalorder %s23, 1
      %p211 = por %p209, %p210
      %p212 = scmp.ne.s32.totalorder %s204, %s207
      %p213 = scmp.eq.s32.totalorder %s23, 0
      %p214 = por %p212, %p213
      %p215 = scmp.ne.s32.totalorder %s204, %s207
      %p216 = scmp.eq.s32.totalorder %s28, 1
      %p217 = por %p215, %p216
      %p218 = scmp.ne.s32.totalorder %s207, %s208
      %p219 = scmp.eq.s32.totalorder %s28, 0
      %p220 = por %p218, %p219
      %p221 = scmp.ne.s32.totalorder %s207, %s208
      %p222 = scmp.eq.s32.totalorder %s29, 1
      %p223 = por %p221, %p222
      %p225 = scmp.ne.s32.totalorder %s208, %s224
      %p226 = scmp.eq.s32.totalorder %s29, 0
      %p227 = por %p225, %p226
      %s228 = ssub.s32 %s30, %s56
      %s229 = ssub.s32 %s31, %s52
      %s230 = sor.u32 %s228, %s229
      %s231 = ssub.s32 %s32, %s48
      %s232 = sor.u32 %s230, %s231
      %s233 = ssub.s32 %s33, %s44
      %s234 = sor.u32 %s232, %s233
      %p235 = scmp.eq.s32.totalorder %s234, 0
      %s237 = sadd.s32 %s236, 1
      %s238 = scalar_select %p235, %s236, %s237
      %p241 = pneg %p235
      %p242 = scmp.eq.s32.totalorder %s23, 1
      %p243 = por %p241, %p242
      %p244 = scmp.ne.s32.totalorder %s236, %s239
      %p245 = scmp.eq.s32.totalorder %s23, 0
      %p246 = por %p244, %p245
      %p247 = scmp.ne.s32.totalorder %s236, %s239
      %p248 = scmp.eq.s32.totalorder %s28, 1
      %p249 = por %p247, %p248
      %p250 = scmp.ne.s32.totalorder %s239, %s240
      %p251 = scmp.eq.s32.totalorder %s28, 0
      %p252 = por %p250, %p251
      %p253 = scmp.ne.s32.totalorder %s239, %s240
      %p254 = scmp.eq.s32.totalorder %s29, 1
      %p255 = por %p253, %p254
      %p257 = scmp.ne.s32.totalorder %s240, %s256
      %p258 = scmp.eq.s32.totalorder %s29, 0
      %p259 = por %p257, %p258
      %p260 = scmp.le.s32.totalorder 1, %s23
      %p261 = scmp.lt.s32.totalorder %s23, 3
      %p262 = pnand %p260, %p261
      %p263 = pneg %p262
      // Predicated region
      $region9: #{tpu_custom_call.1} parent=5 // pred_check
        _
      $region10: #{tpu_custom_call.1} parent=5 // pred_check_branch
        %265 = sbr.rel (%p262) target = $region12
      $region11: #{tpu_custom_call.1} parent=5 // pred_region
        %s266 = ssub.s32 %s23, 1
        // Predicated region
        $region13: #{tpu_custom_call.1} parent=11 // pred_check
          %p267 = pneg %p126
        $region14: #{tpu_custom_call.1} parent=11 // pred_check_branch
          %269 = sbr.rel (%p267) target = $region16
        $region15: #{tpu_custom_call.1} parent=11 // pred_region
          %s271 = ssub.s32 128, 128
          %272 = vsyncadd [#allocation7], %s271
          %s273 = sshll.u32 [#allocation8], 4
          %s274 = int_to_ptr.vmem [resolvable:$true] %s273
          %279 = dma.hbm_to_vmem [thread:$0]  %s2, 128, %s274, [#allocation7], 64, 64, 4
        $region16: #{tpu_custom_call.1} parent=11 // pred_fallthru
          _
        // Predicated region
        $region17: #{tpu_custom_call.1} parent=11 // pred_check
          %p280 = pneg %p147
        $region18: #{tpu_custom_call.1} parent=11 // pred_check_branch
          %282 = sbr.rel (%p280) target = $region20
        $region19: #{tpu_custom_call.1} parent=11 // pred_region
          %s284 = ssub.s32 128, 128
          %285 = vsyncadd [#allocation10], %s284
          %s286 = sshll.u32 [#allocation9], 4
          %s287 = int_to_ptr.vmem [resolvable:$true] %s286
          %292 = dma.hbm_to_vmem [thread:$0]  %s3, 128, %s287, [#allocation10], 64, 64, 4
        $region20: #{tpu_custom_call.1} parent=11 // pred_fallthru
          _
        // Predicated region
        $region21: #{tpu_custom_call.1} parent=11 // pred_check
          %p293 = pneg %p168
        $region22: #{tpu_custom_call.1} parent=11 // pred_check_branch
          %295 = sbr.rel (%p293) target = $region24
        $region23: #{tpu_custom_call.1} parent=11 // pred_region
          _
        $region24: #{tpu_custom_call.1} parent=11 // pred_fallthru
          _
        // Predicated region
        $region25: #{tpu_custom_call.1} parent=11 // pred_check
          %p296 = pneg %p194
        $region26: #{tpu_custom_call.1} parent=11 // pred_check_branch
          %298 = sbr.rel (%p296) target = $region28
        $region27: #{tpu_custom_call.1} parent=11 // pred_region
          %p299 = scmp.lt.s32.totalorder %s37, 0
          %s300 = scalar_select %p299, %s37, 0
          %s301 = smul.addr %s300, 4
          %s302 = scalar_lea.vmem %s5, %s301
        $region28: #{tpu_custom_call.1} parent=11 // pred_fallthru
          _
        // Predicated region
        $region29: #{tpu_custom_call.1} parent=11 // pred_check
          %p303 = pneg %p220
        $region30: #{tpu_custom_call.1} parent=11 // pred_check_branch
          %305 = sbr.rel (%p303) target = $region32
        $region31: #{tpu_custom_call.1} parent=11 // pred_region
          %p306 = scmp.lt.s32.totalorder %s37, 0
          %s307 = scalar_select %p306, %s37, 0
          %s308 = scalar_lea.vmem %s6, %s307
        $region32: #{tpu_custom_call.1} parent=11 // pred_fallthru
          _
      $region12: #{tpu_custom_call.1} parent=5 // pred_fallthru
        _
      %p309 = scmp.lt.s32.totalorder %s23, 2
      // Predicated region
      $region33: #{tpu_custom_call.1} parent=5 // pred_check
        %p310 = pneg %p309
      $region34: #{tpu_custom_call.1} parent=5 // pred_check_branch
        %312 = sbr.rel (%p310) target = $region36
      $region35: #{tpu_custom_call.1} parent=5 // pred_region
        // Predicated region
        $region37: #{tpu_custom_call.1} parent=35 // pred_check
          %p313 = pneg %p71
        $region38: #{tpu_custom_call.1} parent=35 // pred_check_branch
          %315 = sbr.rel (%p313) target = $region40
        $region39: #{tpu_custom_call.1} parent=35 // pred_region
          %s316 = sand.u32 %s61, 1
          %s317 = scalar_lea.sflag [#allocation4], %s316
          %s318 = sand.u32 %s61, 1
          %s319 = smul.addr %s318, 8
          %s320 = scalar_lea.vmem [#allocation3], %s319
          %s321 = smul.u32 2, %s31
          %s323 = ssub.s32 128, 128
          %324 = vsyncadd %s317, %s323
          %s325 = smul.addr %s30, 2
          %s326 = sadd.s32 %s321, %s325
          %s327 = smul.addr %s326, 64
          %s328 = scalar_lea.hbm %s0, %s327
          %s329 = sshll.u32 %s320, 4
          %s330 = int_to_ptr.vmem [resolvable:$true] %s329
          %335 = dma.hbm_to_vmem [thread:$0]  %s328, 128, %s330, %s317, 64, 64, 4
        $region40: #{tpu_custom_call.1} parent=35 // pred_fallthru
          _
        // Predicated region
        $region41: #{tpu_custom_call.1} parent=35 // pred_check
          %p336 = pneg %p99
        $region42: #{tpu_custom_call.1} parent=35 // pred_check_branch
          %338 = sbr.rel (%p336) target = $region44
        $region43: #{tpu_custom_call.1} parent=35 // pred_region
          %s339 = sand.u32 %s23, 1
          %s340 = scalar_lea.sflag [#allocation7], %s339
          %s341 = sand.u32 %s89, 1
          %s342 = smul.addr %s341, 8
          %s343 = scalar_lea.vmem [#allocation6], %s342
          %s344 = smul.u32 2, %s32
          %s346 = ssub.s32 128, 128
          %347 = vsyncadd %s340, %s346
          %s348 = smul.addr %s30, 2
          %s349 = sadd.s32 %s344, %s348
          %s350 = smul.addr %s349, 64
          %s351 = scalar_lea.hbm %s1, %s350
          %s352 = sshll.u32 %s343, 4
          %s353 = int_to_ptr.vmem [resolvable:$true] %s352
          %358 = dma.hbm_to_vmem [thread:$0]  %s351, 128, %s353, %s340, 64, 64, 4
        $region44: #{tpu_custom_call.1} parent=35 // pred_fallthru
          _
      $region36: #{tpu_custom_call.1} parent=5 // pred_fallthru
        _
      %p359 = scmp.le.s32.totalorder 1, %s23
      %p360 = scmp.lt.s32.totalorder %s23, 3
      %p361 = pnand %p359, %p360
      %p362 = pneg %p361
      // Predicated region
      $region45: #{tpu_custom_call.1} parent=5 // pred_check
        _
      $region46: #{tpu_custom_call.1} parent=5 // pred_check_branch
        %364 = sbr.rel (%p361) target = $region48
      $region47: #{tpu_custom_call.1} parent=5 // pred_region
        %s365 = ssub.s32 %s23, 1
        %s366 = sand.u32 %s64, 1
        %s367 = scalar_lea.sflag [#allocation4], %s366
        %s368 = sand.u32 %s64, 1
        %s369 = smul.addr %s368, 8
        %s370 = scalar_lea.vmem [#allocation3], %s369
        // Predicated region
        $region49: #{tpu_custom_call.1} parent=47 // pred_check
          %p371 = pneg %p77
        $region50: #{tpu_custom_call.1} parent=47 // pred_check_branch
          %373 = sbr.rel (%p371) target = $region52
        $region51: #{tpu_custom_call.1} parent=47 // pred_region
          %374 = dma.done %s367, 128
        $region52: #{tpu_custom_call.1} parent=47 // pred_fallthru
          _
        %s375 = sand.u32 %s28, 1
        %s376 = scalar_lea.sflag [#allocation7], %s375
        %s377 = sand.u32 %s92, 1
        %s378 = smul.addr %s377, 8
        %s379 = scalar_lea.vmem [#allocation6], %s378
        // Predicated region
        $region53: #{tpu_custom_call.1} parent=47 // pred_check
          %p380 = pneg %p105
        $region54: #{tpu_custom_call.1} parent=47 // pred_check_branch
          %382 = sbr.rel (%p380) target = $region56
        $region55: #{tpu_custom_call.1} parent=47 // pred_region
          %383 = dma.done %s376, 128
        $region56: #{tpu_custom_call.1} parent=47 // pred_fallthru
          _
        // Predicated region
        $region57: #{tpu_custom_call.1} parent=47 // pred_check
          %p384 = pneg %p126
        $region58: #{tpu_custom_call.1} parent=47 // pred_check_branch
          %386 = sbr.rel (%p384) target = $region60
        $region59: #{tpu_custom_call.1} parent=47 // pred_region
          %387 = dma.done [#allocation7], 128
        $region60: #{tpu_custom_call.1} parent=47 // pred_fallthru
          _
        // Predicated region
        $region61: #{tpu_custom_call.1} parent=47 // pred_check
          %p388 = pneg %p147
        $region62: #{tpu_custom_call.1} parent=47 // pred_check_branch
          %390 = sbr.rel (%p388) target = $region64
        $region63: #{tpu_custom_call.1} parent=47 // pred_region
          %391 = dma.done [#allocation10], 128
        $region64: #{tpu_custom_call.1} parent=47 // pred_fallthru
          _
        %s392 = sand.u32 %s64, 1
        %s393 = scalar_lea.sflag [#allocation4], %s392
        %s394 = sand.u32 %s64, 1
        %s395 = smul.addr %s394, 8
        %s396 = scalar_lea.vmem [#allocation3], %s395
        %p397 = pneg %p77
        %p398 = pneg %p74
        %s399 = sand.u32 %s28, 1
        %s400 = scalar_lea.sflag [#allocation7], %s399
        %s401 = sand.u32 %s92, 1
        %s402 = smul.addr %s401, 8
        %s403 = scalar_lea.vmem [#allocation6], %s402
        %p404 = pneg %p105
        %p405 = pneg %p102
        %p406 = pneg %p126
        %p407 = pneg %p123
        %p408 = pneg %p147
        %p409 = pneg %p144
        %p410 = pneg %p168
        %p411 = pneg %p165
        %p412 = scmp.lt.s32.totalorder %s37, 0
        %s413 = scalar_select %p412, %s37, 0
        %s414 = smul.addr %s413, 4
        %s415 = scalar_lea.vmem %s5, %s414
        %p416 = pneg %p194
        %p417 = pneg %p191
        %p418 = scmp.lt.s32.totalorder %s37, 0
        %s419 = scalar_select %p418, %s37, 0
        %s420 = scalar_lea.vmem %s6, %s419
        %p421 = pneg %p220
        %p422 = pneg %p217
        %p423 = pneg %p252
        %p424 = pneg %p249
        %s425 = sand.u32 %s239, 1
        %s426 = scalar_lea.sflag [#allocation5], %s425
        %s427 = sand.u32 %s239, 1
        %s428 = smul.addr %s427, 128
        %s429 = scalar_lea.vmem [#allocation11], %s428
        %s430 = smul.u32 2, %s35
        %s431 = smul.u32 2, %s36
        %p432 = scmp.lt.s32.totalorder %s37, 0
        %s433 = scalar_select %p432, %s37, 0
        %s434 = smul.addr %s433, 4
        %s435 = scalar_lea.vmem %s5, %s434
        %p436 = scmp.lt.s32.totalorder %s37, 0
        %s437 = scalar_select %p436, %s37, 0
        %s438 = scalar_lea.vmem %s6, %s437
        %s439 = smul.u32 16, %s35
        %s440 = smul.u32 2, %s36
        %p442 = scmp.eq.s32.totalorder %s37, 0
        // Predicated region
        $region65: #{tpu_custom_call.1} parent=47 // pred_check
          %p443 = pneg %p442
        $region66: #{tpu_custom_call.1} parent=47 // pred_check_branch
          %445 = sbr.rel (%p443) target = $region68
        $region67: #{tpu_custom_call.1} parent=47 // pred_region
          %v446 = vld [vmem:[%s370] sm:$0xf]
          %v447 = vld [vmem:[%s370 + $0x4] sm:$0xf]
          %v448 = vld [vmem:[#allocation8] sm:$0xf]
          %v449 = vld [vmem:[#allocation8 + $0x4] sm:$0xf]
          %v452 = vunpack.c.l.b16 %v446
          %v453 = vunpack.c.l.b16 %v447
          %v454 = vpack.c.b16 %v453, %v452
          %v457 = vunpack.c.l.b16 %v448
          %v458 = vunpack.c.l.b16 %v449
          %v459 = vpack.c.b16 %v458, %v457
          %vm461 = vcmask 130048
          %v463 = vsel %vm461, %v454, 0
          %465 = vmatprep.subr.bf16.mxu0 0
          %466 = vmatpush1.bf16.msra.mxu0 %v459
          %467 = vmatprep.subr.bf16.mxu0 0
          %468 = vmatpush1.bf16.msra.mxu0 0
          %469 = vmatprep.subr.bf16.mxu0 0
          %470 = vmatpush1.bf16.msra.mxu0 0
          %471 = vmatprep.subr.bf16.mxu0 0
          %472 = vmatpush1.bf16.msra.mxu0 0
          %473 = vmatprep.subr.bf16.mxu0 0
          %474 = vmatpush1.bf16.msra.mxu0 0
          %475 = vmatprep.subr.bf16.mxu0 0
          %476 = vmatpush1.bf16.msra.mxu0 0
          %477 = vmatprep.subr.bf16.mxu0 0
          %478 = vmatpush1.bf16.msra.mxu0 0
          %479 = vmatprep.subr.bf16.mxu0 0
          %480 = vmatpush1.bf16.msra.mxu0 0
          %481 = vmatprep.subr.bf16.mxu0 0
          %482 = vmatpush1.bf16.msra.mxu0 0
          %483 = vmatprep.subr.bf16.mxu0 0
          %484 = vmatpush1.bf16.msra.mxu0 0
          %485 = vmatprep.subr.bf16.mxu0 0
          %486 = vmatpush1.bf16.msra.mxu0 0
          %487 = vmatprep.subr.bf16.mxu0 0
          %488 = vmatpush1.bf16.msra.mxu0 0
          %489 = vmatprep.subr.bf16.mxu0 0
          %490 = vmatpush1.bf16.msra.mxu0 0
          %491 = vmatprep.subr.bf16.mxu0 0
          %492 = vmatpush1.bf16.msra.mxu0 0
          %493 = vmatprep.subr.bf16.mxu0 0
          %494 = vmatpush1.bf16.msra.mxu0 0
          %495 = vmatprep.subr.bf16.mxu0 0
          %496 = vmatpush1.bf16.msra.mxu0 0
          %497 = vmatprep.mubr.bf16.mxu0 0
          %498 = vmatmul.mubr.bf16.gmra.mrb[0].mxu0 %v463
          %v499 = vpop.f32.mrb[0].mxu0
          %v500 = vadd.f32 0.0, %v499
          %v501 = vpop.f32.mrb[0].mxu0
          %v502 = vpop.f32.mrb[0].mxu0
          %v503 = vadd.f32 0.0, %v502
          %v504 = vpop.f32.mrb[0].mxu0
          %505 = vdwg.mxu0
          %v506 = vld [vmem:[%s379] sm:$0xf]
          %v507 = vld [vmem:[%s379 + $0x4] sm:$0xf]
          %v508 = vld [vmem:[#allocation9] sm:$0xf]
          %v509 = vld [vmem:[#allocation9 + $0x4] sm:$0xf]
          %v510 = vld [vmem:[%s4] sm:$0x1]
          %v512 = vlaneseq
          %v513 = vshrl.u32 %v512, 7
          %v514 = vsub.s32 0, %v513
          %v515 = vrot.slane %v510, %v514
          %v519 = vunpack.c.l.b16 %v506
          %v520 = vunpack.c.l.b16 %v507
          %v521 = vpack.c.b16 %v520, %v519
          %v524 = vunpack.c.l.b16 %v508
          %v525 = vunpack.c.l.b16 %v509
          %v526 = vpack.c.b16 %v525, %v524
          %v529 = vsel %vm461, %v521, 0
          %531 = vmatprep.subr.bf16.mxu0 0
          %532 = vmatpush1.bf16.msra.mxu0 %v526
          %533 = vmatprep.subr.bf16.mxu0 0
          %534 = vmatpush1.bf16.msra.mxu0 0
          %535 = vmatprep.subr.bf16.mxu0 0
          %536 = vmatpush1.bf16.msra.mxu0 0
          %537 = vmatprep.subr.bf16.mxu0 0
          %538 = vmatpush1.bf16.msra.mxu0 0
          %539 = vmatprep.subr.bf16.mxu0 0
          %540 = vmatpush1.bf16.msra.mxu0 0
          %541 = vmatprep.subr.bf16.mxu0 0
          %542 = vmatpush1.bf16.msra.mxu0 0
          %543 = vmatprep.subr.bf16.mxu0 0
          %544 = vmatpush1.bf16.msra.mxu0 0
          %545 = vmatprep.subr.bf16.mxu0 0
          %546 = vmatpush1.bf16.msra.mxu0 0
          %547 = vmatprep.subr.bf16.mxu0 0
          %548 = vmatpush1.bf16.msra.mxu0 0
          %549 = vmatprep.subr.bf16.mxu0 0
          %550 = vmatpush1.bf16.msra.mxu0 0
          %551 = vmatprep.subr.bf16.mxu0 0
          %552 = vmatpush1.bf16.msra.mxu0 0
          %553 = vmatprep.subr.bf16.mxu0 0
          %554 = vmatpush1.bf16.msra.mxu0 0
          %555 = vmatprep.subr.bf16.mxu0 0
          %556 = vmatpush1.bf16.msra.mxu0 0
          %557 = vmatprep.subr.bf16.mxu0 0
          %558 = vmatpush1.bf16.msra.mxu0 0
          %559 = vmatprep.subr.bf16.mxu0 0
          %560 = vmatpush1.bf16.msra.mxu0 0
          %561 = vmatprep.subr.bf16.mxu0 0
          %562 = vmatpush1.bf16.msra.mxu0 0
          %563 = vmatprep.mubr.bf16.mxu0 0
          %564 = vmatmul.mubr.bf16.gmra.mrb[0].mxu0 %v529
          %v565 = vpop.f32.mrb[0].mxu0
          %v566 = vadd.f32 %v515, %v565
          %v567 = vpop.f32.mrb[0].mxu0
          %v568 = vpop.f32.mrb[0].mxu0
          %v569 = vadd.f32 %v515, %v568
          %v570 = vpop.f32.mrb[0].mxu0
          %571 = vdwg.mxu0
          %v574 = vcombine.high %v500, %v500
          %v576 = vunpack.c.l.s4 1966171168
          %v577 = vunpack.c.0.s8 %v576
          %v578 = vlaneseq
          %v579 = vshrl.u32 %v578, 7
          %v580 = vsub.s32 %v577, %v579
          %v581 = vrot.slane %v500, %v580
          %v583 = vunpack.c.l.s4 1966171168
          %v584 = vunpack.c.0.s8 %v583
          %v585 = vlaneseq
          %v586 = vshrl.u32 %v585, 7
          %v587 = vsub.s32 %v584, %v586
          %v588 = vrot.slane %v574, %v587
          %v589 = vcombine.high %v581, %v581
          %v590 = vcombine.high %v588, %v588
          %v592 = vunpack.c.l.s4 1966171168
          %v593 = vunpack.c.0.s8 %v592
          %v594 = vlaneseq
          %v595 = vshrl.u32 %v594, 7
          %v596 = vsub.s32 %v593, %v595
          %v597 = vrot.slane %v581, %v596
          %v599 = vunpack.c.l.s4 1966171168
          %v600 = vunpack.c.0.s8 %v599
          %v601 = vlaneseq
          %v602 = vshrl.u32 %v601, 7
          %v603 = vsub.s32 %v600, %v602
          %v604 = vrot.slane %v588, %v603
          %v606 = vunpack.c.l.s4 1966171168
          %v607 = vunpack.c.0.s8 %v606
          %v608 = vlaneseq
          %v609 = vshrl.u32 %v608, 7
          %v610 = vsub.s32 %v607, %v609
          %v611 = vrot.slane %v589, %v610
          %v613 = vunpack.c.l.s4 1966171168
          %v614 = vunpack.c.0.s8 %v613
          %v615 = vlaneseq
          %v616 = vshrl.u32 %v615, 7
          %v617 = vsub.s32 %v614, %v616
          %v618 = vrot.slane %v590, %v617
          %v619 = vcombine.high %v597, %v597
          %v620 = vcombine.high %v604, %v604
          %v621 = vcombine.high %v611, %v611
          %v622 = vcombine.high %v618, %v618
          %v623 = vcombine.high %v503, %v503
          %v625 = vunpack.c.l.s4 1966171168
          %v626 = vunpack.c.0.s8 %v625
          %v627 = vlaneseq
          %v628 = vshrl.u32 %v627, 7
          %v629 = vsub.s32 %v626, %v628
          %v630 = vrot.slane %v503, %v629
          %v632 = vunpack.c.l.s4 1966171168
          %v633 = vunpack.c.0.s8 %v632
          %v634 = vlaneseq
          %v635 = vshrl.u32 %v634, 7
          %v636 = vsub.s32 %v633, %v635
          %v637 = vrot.slane %v623, %v636
          %v638 = vcombine.high %v630, %v630
          %v639 = vcombine.high %v637, %v637
          %v641 = vunpack.c.l.s4 1966171168
          %v642 = vunpack.c.0.s8 %v641
          %v643 = vlaneseq
          %v644 = vshrl.u32 %v643, 7
          %v645 = vsub.s32 %v642, %v644
          %v646 = vrot.slane %v630, %v645
          %v648 = vunpack.c.l.s4 1966171168
          %v649 = vunpack.c.0.s8 %v648
          %v650 = vlaneseq
          %v651 = vshrl.u32 %v650, 7
          %v652 = vsub.s32 %v649, %v651
          %v653 = vrot.slane %v637, %v652
          %v655 = vunpack.c.l.s4 1966171168
          %v656 = vunpack.c.0.s8 %v655
          %v657 = vlaneseq
          %v658 = vshrl.u32 %v657, 7
          %v659 = vsub.s32 %v656, %v658
          %v660 = vrot.slane %v638, %v659
          %v662 = vunpack.c.l.s4 1966171168
          %v663 = vunpack.c.0.s8 %v662
          %v664 = vlaneseq
          %v665 = vshrl.u32 %v664, 7
          %v666 = vsub.s32 %v663, %v665
          %v667 = vrot.slane %v639, %v666
          %v668 = vcombine.high %v646, %v646
          %v669 = vcombine.high %v653, %v653
          %v670 = vcombine.high %v660, %v660
          %v671 = vcombine.high %v667, %v667
          %v672 = vlaneseq
          %v673 = vshrl.u32 %v672, 7
          %v674 = vsub.s32 0, %v673
          %v675 = vrot.slane %v597, %v674
          %v676 = vlaneseq
          %v677 = vshrl.u32 %v676, 7
          %v678 = vsub.s32 0, %v677
          %v679 = vrot.slane %v611, %v678
          %v680 = vlaneseq
          %v681 = vshrl.u32 %v680, 7
          %v682 = vsub.s32 0, %v681
          %v683 = vrot.slane %v619, %v682
          %v684 = vlaneseq
          %v685 = vshrl.u32 %v684, 7
          %v686 = vsub.s32 0, %v685
          %v687 = vrot.slane %v621, %v686
          %v688 = vlaneseq
          %v689 = vshrl.u32 %v688, 7
          %v690 = vsub.s32 0, %v689
          %v691 = vrot.slane %v604, %v690
          %v692 = vlaneseq
          %v693 = vshrl.u32 %v692, 7
          %v694 = vsub.s32 0, %v693
          %v695 = vrot.slane %v618, %v694
          %v696 = vlaneseq
          %v697 = vshrl.u32 %v696, 7
          %v698 = vsub.s32 0, %v697
          %v699 = vrot.slane %v620, %v698
          %v700 = vlaneseq
          %v701 = vshrl.u32 %v700, 7
          %v702 = vsub.s32 0, %v701
          %v703 = vrot.slane %v622, %v702
          %v704 = vlaneseq
          %v705 = vshrl.u32 %v704, 7
          %v706 = vsub.s32 0, %v705
          %v707 = vrot.slane %v646, %v706
          %v708 = vlaneseq
          %v709 = vshrl.u32 %v708, 7
          %v710 = vsub.s32 0, %v709
          %v711 = vrot.slane %v660, %v710
          %v712 = vlaneseq
          %v713 = vshrl.u32 %v712, 7
          %v714 = vsub.s32 0, %v713
          %v715 = vrot.slane %v668, %v714
          %v716 = vlaneseq
          %v717 = vshrl.u32 %v716, 7
          %v718 = vsub.s32 0, %v717
          %v719 = vrot.slane %v670, %v718
          %v720 = vlaneseq
          %v721 = vshrl.u32 %v720, 7
          %v722 = vsub.s32 0, %v721
          %v723 = vrot.slane %v653, %v722
          %v724 = vlaneseq
          %v725 = vshrl.u32 %v724, 7
          %v726 = vsub.s32 0, %v725
          %v727 = vrot.slane %v667, %v726
          %v728 = vlaneseq
          %v729 = vshrl.u32 %v728, 7
          %v730 = vsub.s32 0, %v729
          %v731 = vrot.slane %v669, %v730
          %v732 = vlaneseq
          %v733 = vshrl.u32 %v732, 7
          %v734 = vsub.s32 0, %v733
          %v735 = vrot.slane %v671, %v734
          %v752 = vadd.f32 %v675, %v566
          %v753 = vadd.f32 %v675, %v569
          %v754 = vadd.f32 %v679, %v566
          %v755 = vadd.f32 %v679, %v569
          %v756 = vadd.f32 %v683, %v566
          %v757 = vadd.f32 %v683, %v569
          %v758 = vadd.f32 %v687, %v566
          %v759 = vadd.f32 %v687, %v569
          %v760 = vadd.f32 %v691, %v566
          %v761 = vadd.f32 %v691, %v569
          %v762 = vadd.f32 %v695, %v566
          %v763 = vadd.f32 %v695, %v569
          %v764 = vadd.f32 %v699, %v566
          %v765 = vadd.f32 %v699, %v569
          %v766 = vadd.f32 %v703, %v566
          %v767 = vadd.f32 %v703, %v569
          %v768 = vadd.f32 %v707, %v566
          %v769 = vadd.f32 %v707, %v569
          %v770 = vadd.f32 %v711, %v566
          %v771 = vadd.f32 %v711, %v569
          %v772 = vadd.f32 %v715, %v566
          %v773 = vadd.f32 %v715, %v569
          %v774 = vadd.f32 %v719, %v566
          %v775 = vadd.f32 %v719, %v569
          %v776 = vadd.f32 %v723, %v566
          %v777 = vadd.f32 %v723, %v569
          %v778 = vadd.f32 %v727, %v566
          %v779 = vadd.f32 %v727, %v569
          %v780 = vadd.f32 %v731, %v566
          %v781 = vadd.f32 %v731, %v569
          %v782 = vadd.f32 %v735, %v566
          %v783 = vadd.f32 %v735, %v569
          %v784 = vtanh.pop %v752
          %v785 = vtanh.pop %v753
          %v786 = vtanh.pop %v754
          %v787 = vtanh.pop %v755
          %v788 = vtanh.pop %v756
          %v789 = vtanh.pop %v757
          %v790 = vtanh.pop %v758
          %v791 = vtanh.pop %v759
          %v792 = vtanh.pop %v760
          %v793 = vtanh.pop %v761
          %v794 = vtanh.pop %v762
          %v795 = vtanh.pop %v763
          %v796 = vtanh.pop %v764
          %v797 = vtanh.pop %v765
          %v798 = vtanh.pop %v766
          %v799 = vtanh.pop %v767
          %v800 = vtanh.pop %v768
          %v801 = vtanh.pop %v769
          %v802 = vtanh.pop %v770
          %v803 = vtanh.pop %v771
          %v804 = vtanh.pop %v772
          %v805 = vtanh.pop %v773
          %v806 = vtanh.pop %v774
          %v807 = vtanh.pop %v775
          %v808 = vtanh.pop %v776
          %v809 = vtanh.pop %v777
          %v810 = vtanh.pop %v778
          %v811 = vtanh.pop %v779
          %v812 = vtanh.pop %v780
          %v813 = vtanh.pop %v781
          %v814 = vtanh.pop %v782
          %v815 = vtanh.pop %v783
          %v816 = vpack.c.bf16 %v785, %v784
          %v817 = vpack.c.bf16 %v787, %v786
          %v818 = vpack.c.bf16 %v789, %v788
          %v819 = vpack.c.bf16 %v791, %v790
          %v820 = vpack.c.bf16 %v793, %v792
          %v821 = vpack.c.bf16 %v795, %v794
          %v822 = vpack.c.bf16 %v797, %v796
          %v823 = vpack.c.bf16 %v799, %v798
          %v824 = vpack.c.bf16 %v801, %v800
          %v825 = vpack.c.bf16 %v803, %v802
          %v826 = vpack.c.bf16 %v805, %v804
          %v827 = vpack.c.bf16 %v807, %v806
          %v828 = vpack.c.bf16 %v809, %v808
          %v829 = vpack.c.bf16 %v811, %v810
          %v830 = vpack.c.bf16 %v813, %v812
          %v831 = vpack.c.bf16 %v815, %v814
          %vm832 = vcmask 261120
          %833 = vst.msk [vmem:[#allocation2] sm:$0xff] %vm832, %v816
          %834 = vst.msk [vmem:[#allocation2 + $0x8] sm:$0xff] %vm832, %v817
          %835 = vst.msk [vmem:[#allocation2 + $0x10] sm:$0xff] %vm832, %v818
          %836 = vst.msk [vmem:[#allocation2 + $0x18] sm:$0xff] %vm832, %v819
          %837 = vst.msk [vmem:[#allocation2 + $0x20] sm:$0xff] %vm832, %v820
          %838 = vst.msk [vmem:[#allocation2 + $0x28] sm:$0xff] %vm832, %v821
          %839 = vst.msk [vmem:[#allocation2 + $0x30] sm:$0xff] %vm832, %v822
          %840 = vst.msk [vmem:[#allocation2 + $0x38] sm:$0xff] %vm832, %v823
          %841 = vst.msk [vmem:[#allocation2 + $0x40] sm:$0xff] %vm832, %v824
          %842 = vst.msk [vmem:[#allocation2 + $0x48] sm:$0xff] %vm832, %v825
          %843 = vst.msk [vmem:[#allocation2 + $0x50] sm:$0xff] %vm832, %v826
          %844 = vst.msk [vmem:[#allocation2 + $0x58] sm:$0xff] %vm832, %v827
          %845 = vst.msk [vmem:[#allocation2 + $0x60] sm:$0xff] %vm832, %v828
          %846 = vst.msk [vmem:[#allocation2 + $0x68] sm:$0xff] %vm832, %v829
          %847 = vst.msk [vmem:[#allocation2 + $0x70] sm:$0xff] %vm832, %v830
          %848 = vst.msk [vmem:[#allocation2 + $0x78] sm:$0xff] %vm832, %v831
        $region68: #{tpu_custom_call.1} parent=47 // pred_fallthru
          _
        %v849 = vld [vmem:[#allocation2] sm:$0xff]
        %v850 = vld [vmem:[#allocation2 + $0x8] sm:$0xff]
        %v851 = vld [vmem:[#allocation2 + $0x10] sm:$0xff]
        %v852 = vld [vmem:[#allocation2 + $0x18] sm:$0xff]
        %v853 = vld [vmem:[#allocation2 + $0x20] sm:$0xff]
        %v854 = vld [vmem:[#allocation2 + $0x28] sm:$0xff]
        %v855 = vld [vmem:[#allocation2 + $0x30] sm:$0xff]
        %v856 = vld [vmem:[#allocation2 + $0x38] sm:$0xff]
        %v857 = vld [vmem:[#allocation2 + $0x40] sm:$0xff]
        %v858 = vld [vmem:[#allocation2 + $0x48] sm:$0xff]
        %v859 = vld [vmem:[#allocation2 + $0x50] sm:$0xff]
        %v860 = vld [vmem:[#allocation2 + $0x58] sm:$0xff]
        %v861 = vld [vmem:[#allocation2 + $0x60] sm:$0xff]
        %v862 = vld [vmem:[#allocation2 + $0x68] sm:$0xff]
        %v863 = vld [vmem:[#allocation2 + $0x70] sm:$0xff]
        %v864 = vld [vmem:[#allocation2 + $0x78] sm:$0xff]
        %v865 = vld [vmem:[%s435] sm:$0xf]
        %v866 = vld [vmem:[%s435 + $0x4] sm:$0xf]
        %v867 = vld [vmem:[%s435 + $0x8] sm:$0xf]
        %v868 = vld [vmem:[%s435 + $0xc] sm:$0xf]
        %v869 = vld [vmem:[%s438] sm:$0x1]
        %v871 = vlaneseq
        %v872 = vshrl.u32 %v871, 7
        %v873 = vsub.s32 0, %v872
        %v874 = vrot.slane %v869, %v873
        %v880 = vunpack.c.l.b16 %v865
        %v881 = vunpack.c.l.b16 %v866
        %v882 = vunpack.c.l.b16 %v867
        %v883 = vunpack.c.l.b16 %v868
        %v884 = vpack.c.b16 %v881, %v880
        %v885 = vpack.c.b16 %v883, %v882
        %vm888 = vcmask 261120
        %v890 = vsel %vm888, %v849, 0
        %v893 = vsel %vm888, %v850, 0
        %v896 = vsel %vm888, %v851, 0
        %v899 = vsel %vm888, %v852, 0
        %v902 = vsel %vm888, %v853, 0
        %v905 = vsel %vm888, %v854, 0
        %v908 = vsel %vm888, %v855, 0
        %v911 = vsel %vm888, %v856, 0
        %v914 = vsel %vm888, %v857, 0
        %v917 = vsel %vm888, %v858, 0
        %v920 = vsel %vm888, %v859, 0
        %v923 = vsel %vm888, %v860, 0
        %v926 = vsel %vm888, %v861, 0
        %v929 = vsel %vm888, %v862, 0
        %v932 = vsel %vm888, %v863, 0
        %v935 = vsel %vm888, %v864, 0
        %937 = vmatprep.subr.bf16.mxu0 0
        %938 = vmatpush1.bf16.msra.mxu0 %v884
        %939 = vmatprep.subr.bf16.mxu0 0
        %940 = vmatpush1.bf16.msra.mxu0 %v885
        %941 = vmatprep.subr.bf16.mxu0 0
        %942 = vmatpush1.bf16.msra.mxu0 0
        %943 = vmatprep.subr.bf16.mxu0 0
        %944 = vmatpush1.bf16.msra.mxu0 0
        %945 = vmatprep.subr.bf16.mxu0 0
        %946 = vmatpush1.bf16.msra.mxu0 0
        %947 = vmatprep.subr.bf16.mxu0 0
        %948 = vmatpush1.bf16.msra.mxu0 0
        %949 = vmatprep.subr.bf16.mxu0 0
        %950 = vmatpush1.bf16.msra.mxu0 0
        %951 = vmatprep.subr.bf16.mxu0 0
        %952 = vmatpush1.bf16.msra.mxu0 0
        %953 = vmatprep.subr.bf16.mxu0 0
        %954 = vmatpush1.bf16.msra.mxu0 0
        %955 = vmatprep.subr.bf16.mxu0 0
        %956 = vmatpush1.bf16.msra.mxu0 0
        %957 = vmatprep.subr.bf16.mxu0 0
        %958 = vmatpush1.bf16.msra.mxu0 0
        %959 = vmatprep.subr.bf16.mxu0 0
        %960 = vmatpush1.bf16.msra.mxu0 0
        %961 = vmatprep.subr.bf16.mxu0 0
        %962 = vmatpush1.bf16.msra.mxu0 0
        %963 = vmatprep.subr.bf16.mxu0 0
        %964 = vmatpush1.bf16.msra.mxu0 0
        %965 = vmatprep.subr.bf16.mxu0 0
        %966 = vmatpush1.bf16.msra.mxu0 0
        %967 = vmatprep.subr.bf16.mxu0 0
        %968 = vmatpush1.bf16.msra.mxu0 0
        %969 = vmatprep.mubr.bf16.mxu0 0
        %970 = vmatmul.mubr.bf16.gmra.mrb[0].mxu0 %v890
        %v971 = vpop.f32.mrb[0].mxu0
        %v972 = vadd.f32 %v874, %v971
        %v973 = vpop.f32.mrb[0].mxu0
        %v974 = vpop.f32.mrb[0].mxu0
        %v975 = vadd.f32 %v874, %v974
        %v976 = vpop.f32.mrb[0].mxu0
        %977 = vmatprep.mubr.bf16.mxu0 0
        %978 = vmatmul.mubr.bf16.gmra.mrb[0].mxu0 %v893
        %v979 = vpop.f32.mrb[0].mxu0
        %v980 = vadd.f32 %v874, %v979
        %v981 = vpop.f32.mrb[0].mxu0
        %v982 = vpop.f32.mrb[0].mxu0
        %v983 = vadd.f32 %v874, %v982
        %v984 = vpop.f32.mrb[0].mxu0
        %985 = vmatprep.mubr.bf16.mxu0 0
        %986 = vmatmul.mubr.bf16.gmra.mrb[0].mxu0 %v896
        %v987 = vpop.f32.mrb[0].mxu0
        %v988 = vadd.f32 %v874, %v987
        %v989 = vpop.f32.mrb[0].mxu0
        %v990 = vpop.f32.mrb[0].mxu0
        %v991 = vadd.f32 %v874, %v990
        %v992 = vpop.f32.mrb[0].mxu0
        %993 = vmatprep.mubr.bf16.mxu0 0
        %994 = vmatmul.mubr.bf16.gmra.mrb[0].mxu0 %v899
        %v995 = vpop.f32.mrb[0].mxu0
        %v996 = vadd.f32 %v874, %v995
        %v997 = vpop.f32.mrb[0].mxu0
        %v998 = vpop.f32.mrb[0].mxu0
        %v999 = vadd.f32 %v874, %v998
        %v1000 = vpop.f32.mrb[0].mxu0
        %1001 = vmatprep.mubr.bf16.mxu0 0
        %1002 = vmatmul.mubr.bf16.gmra.mrb[0].mxu0 %v902
        %v1003 = vpop.f32.mrb[0].mxu0
        %v1004 = vadd.f32 %v874, %v1003
        %v1005 = vpop.f32.mrb[0].mxu0
        %v1006 = vpop.f32.mrb[0].mxu0
        %v1007 = vadd.f32 %v874, %v1006
        %v1008 = vpop.f32.mrb[0].mxu0
        %1009 = vmatprep.mubr.bf16.mxu0 0
        %1010 = vmatmul.mubr.bf16.gmra.mrb[0].mxu0 %v905
        %v1011 = vpop.f32.mrb[0].mxu0
        %v1012 = vadd.f32 %v874, %v1011
        %v1013 = vpop.f32.mrb[0].mxu0
        %v1014 = vpop.f32.mrb[0].mxu0
        %v1015 = vadd.f32 %v874, %v1014
        %v1016 = vpop.f32.mrb[0].mxu0
        %1017 = vmatprep.mubr.bf16.mxu0 0
        %1018 = vmatmul.mubr.bf16.gmra.mrb[0].mxu0 %v908
        %v1019 = vpop.f32.mrb[0].mxu0
        %v1020 = vadd.f32 %v874, %v1019
        %v1021 = vpop.f32.mrb[0].mxu0
        %v1022 = vpop.f32.mrb[0].mxu0
        %v1023 = vadd.f32 %v874, %v1022
        %v1024 = vpop.f32.mrb[0].mxu0
        %1025 = vmatprep.mubr.bf16.mxu0 0
        %1026 = vmatmul.mubr.bf16.gmra.mrb[0].mxu0 %v911
        %v1027 = vpop.f32.mrb[0].mxu0
        %v1028 = vadd.f32 %v874, %v1027
        %v1029 = vpop.f32.mrb[0].mxu0
        %v1030 = vpop.f32.mrb[0].mxu0
        %v1031 = vadd.f32 %v874, %v1030
        %v1032 = vpop.f32.mrb[0].mxu0
        %1033 = vmatprep.mubr.bf16.mxu0 0
        %1034 = vmatmul.mubr.bf16.gmra.mrb[0].mxu0 %v914
        %v1035 = vpop.f32.mrb[0].mxu0
        %v1036 = vadd.f32 %v874, %v1035
        %v1037 = vpop.f32.mrb[0].mxu0
        %v1038 = vpop.f32.mrb[0].mxu0
        %v1039 = vadd.f32 %v874, %v1038
        %v1040 = vpop.f32.mrb[0].mxu0
        %1041 = vmatprep.mubr.bf16.mxu0 0
        %1042 = vmatmul.mubr.bf16.gmra.mrb[0].mxu0 %v917
        %v1043 = vpop.f32.mrb[0].mxu0
        %v1044 = vadd.f32 %v874, %v1043
        %v1045 = vpop.f32.mrb[0].mxu0
        %v1046 = vpop.f32.mrb[0].mxu0
        %v1047 = vadd.f32 %v874, %v1046
        %v1048 = vpop.f32.mrb[0].mxu0
        %1049 = vmatprep.mubr.bf16.mxu0 0
        %1050 = vmatmul.mubr.bf16.gmra.mrb[0].mxu0 %v920
        %v1051 = vpop.f32.mrb[0].mxu0
        %v1052 = vadd.f32 %v874, %v1051
        %v1053 = vpop.f32.mrb[0].mxu0
        %v1054 = vpop.f32.mrb[0].mxu0
        %v1055 = vadd.f32 %v874, %v1054
        %v1056 = vpop.f32.mrb[0].mxu0
        %1057 = vmatprep.mubr.bf16.mxu0 0
        %1058 = vmatmul.mubr.bf16.gmra.mrb[0].mxu0 %v923
        %v1059 = vpop.f32.mrb[0].mxu0
        %v1060 = vadd.f32 %v874, %v1059
        %v1061 = vpop.f32.mrb[0].mxu0
        %v1062 = vpop.f32.mrb[0].mxu0
        %v1063 = vadd.f32 %v874, %v1062
        %v1064 = vpop.f32.mrb[0].mxu0
        %1065 = vmatprep.mubr.bf16.mxu0 0
        %1066 = vmatmul.mubr.bf16.gmra.mrb[0].mxu0 %v926
        %v1067 = vpop.f32.mrb[0].mxu0
        %v1068 = vadd.f32 %v874, %v1067
        %v1069 = vpop.f32.mrb[0].mxu0
        %v1070 = vpop.f32.mrb[0].mxu0
        %v1071 = vadd.f32 %v874, %v1070
        %v1072 = vpop.f32.mrb[0].mxu0
        %1073 = vmatprep.mubr.bf16.mxu0 0
        %1074 = vmatmul.mubr.bf16.gmra.mrb[0].mxu0 %v929
        %v1075 = vpop.f32.mrb[0].mxu0
        %v1076 = vadd.f32 %v874, %v1075
        %v1077 = vpop.f32.mrb[0].mxu0
        %v1078 = vpop.f32.mrb[0].mxu0
        %v1079 = vadd.f32 %v874, %v1078
        %v1080 = vpop.f32.mrb[0].mxu0
        %1081 = vmatprep.mubr.bf16.mxu0 0
        %1082 = vmatmul.mubr.bf16.gmra.mrb[0].mxu0 %v932
        %v1083 = vpop.f32.mrb[0].mxu0
        %v1084 = vadd.f32 %v874, %v1083
        %v1085 = vpop.f32.mrb[0].mxu0
        %v1086 = vpop.f32.mrb[0].mxu0
        %v1087 = vadd.f32 %v874, %v1086
        %v1088 = vpop.f32.mrb[0].mxu0
        %1089 = vmatprep.mubr.bf16.mxu0 0
        %1090 = vmatmul.mubr.bf16.gmra.mrb[0].mxu0 %v935
        %v1091 = vpop.f32.mrb[0].mxu0
        %v1092 = vadd.f32 %v874, %v1091
        %v1093 = vpop.f32.mrb[0].mxu0
        %v1094 = vpop.f32.mrb[0].mxu0
        %v1095 = vadd.f32 %v874, %v1094
        %v1096 = vpop.f32.mrb[0].mxu0
        %1097 = vdwg.mxu0
        %v1098 = vpack.c.bf16 %v975, %v972
        %v1099 = vpack.c.bf16 %v983, %v980
        %v1100 = vpack.c.bf16 %v991, %v988
        %v1101 = vpack.c.bf16 %v999, %v996
        %v1102 = vpack.c.bf16 %v1007, %v1004
        %v1103 = vpack.c.bf16 %v1015, %v1012
        %v1104 = vpack.c.bf16 %v1023, %v1020
        %v1105 = vpack.c.bf16 %v1031, %v1028
        %v1106 = vpack.c.bf16 %v1039, %v1036
        %v1107 = vpack.c.bf16 %v1047, %v1044
        %v1108 = vpack.c.bf16 %v1055, %v1052
        %v1109 = vpack.c.bf16 %v1063, %v1060
        %v1110 = vpack.c.bf16 %v1071, %v1068
        %v1111 = vpack.c.bf16 %v1079, %v1076
        %v1112 = vpack.c.bf16 %v1087, %v1084
        %v1113 = vpack.c.bf16 %v1095, %v1092
        %v1130 = vunpack.c.l.b16 %v1098
        %v1131 = vunpack.c.h.b16 %v1098
        %v1132 = vunpack.c.l.b16 %v1099
        %v1133 = vunpack.c.h.b16 %v1099
        %v1134 = vunpack.c.l.b16 %v1100
        %v1135 = vunpack.c.h.b16 %v1100
        %v1136 = vunpack.c.l.b16 %v1101
        %v1137 = vunpack.c.h.b16 %v1101
        %v1138 = vunpack.c.l.b16 %v1102
        %v1139 = vunpack.c.h.b16 %v1102
        %v1140 = vunpack.c.l.b16 %v1103
        %v1141 = vunpack.c.h.b16 %v1103
        %v1142 = vunpack.c.l.b16 %v1104
        %v1143 = vunpack.c.h.b16 %v1104
        %v1144 = vunpack.c.l.b16 %v1105
        %v1145 = vunpack.c.h.b16 %v1105
        %v1146 = vunpack.c.l.b16 %v1106
        %v1147 = vunpack.c.h.b16 %v1106
        %v1148 = vunpack.c.l.b16 %v1107
        %v1149 = vunpack.c.h.b16 %v1107
        %v1150 = vunpack.c.l.b16 %v1108
        %v1151 = vunpack.c.h.b16 %v1108
        %v1152 = vunpack.c.l.b16 %v1109
        %v1153 = vunpack.c.h.b16 %v1109
        %v1154 = vunpack.c.l.b16 %v1110
        %v1155 = vunpack.c.h.b16 %v1110
        %v1156 = vunpack.c.l.b16 %v1111
        %v1157 = vunpack.c.h.b16 %v1111
        %v1158 = vunpack.c.l.b16 %v1112
        %v1159 = vunpack.c.h.b16 %v1112
        %v1160 = vunpack.c.l.b16 %v1113
        %v1161 = vunpack.c.h.b16 %v1113
        %v1162 = vpack.c.b16 %v1130, %v1130
        %v1163 = vpack.c.b16 %v1131, %v1131
        %v1164 = vpack.c.b16 %v1132, %v1132
        %v1165 = vpack.c.b16 %v1133, %v1133
        %v1166 = vpack.c.b16 %v1134, %v1134
        %v1167 = vpack.c.b16 %v1135, %v1135
        %v1168 = vpack.c.b16 %v1136, %v1136
        %v1169 = vpack.c.b16 %v1137, %v1137
        %v1170 = vpack.c.b16 %v1138, %v1138
        %v1171 = vpack.c.b16 %v1139, %v1139
        %v1172 = vpack.c.b16 %v1140, %v1140
        %v1173 = vpack.c.b16 %v1141, %v1141
        %v1174 = vpack.c.b16 %v1142, %v1142
        %v1175 = vpack.c.b16 %v1143, %v1143
        %v1176 = vpack.c.b16 %v1144, %v1144
        %v1177 = vpack.c.b16 %v1145, %v1145
        %v1178 = vpack.c.b16 %v1146, %v1146
        %v1179 = vpack.c.b16 %v1147, %v1147
        %v1180 = vpack.c.b16 %v1148, %v1148
        %v1181 = vpack.c.b16 %v1149, %v1149
        %v1182 = vpack.c.b16 %v1150, %v1150
        %v1183 = vpack.c.b16 %v1151, %v1151
        %v1184 = vpack.c.b16 %v1152, %v1152
        %v1185 = vpack.c.b16 %v1153, %v1153
        %v1186 = vpack.c.b16 %v1154, %v1154
        %v1187 = vpack.c.b16 %v1155, %v1155
        %v1188 = vpack.c.b16 %v1156, %v1156
        %v1189 = vpack.c.b16 %v1157, %v1157
        %v1190 = vpack.c.b16 %v1158, %v1158
        %v1191 = vpack.c.b16 %v1159, %v1159
        %v1192 = vpack.c.b16 %v1160, %v1160
        %v1193 = vpack.c.b16 %v1161, %v1161
        %1226 = vst [vmem:[%s429] sm:$0xf] %v1162
        %1227 = vst [vmem:[%s429 + $0x4] sm:$0xf] %v1163
        %1228 = vst [vmem:[%s429 + $0x8] sm:$0xf] %v1164
        %1229 = vst [vmem:[%s429 + $0xc] sm:$0xf] %v1165
        %1230 = vst [vmem:[%s429 + $0x10] sm:$0xf] %v1166
        %1231 = vst [vmem:[%s429 + $0x14] sm:$0xf] %v1167
        %1232 = vst [vmem:[%s429 + $0x18] sm:$0xf] %v1168
        %1233 = vst [vmem:[%s429 + $0x1c] sm:$0xf] %v1169
        %1234 = vst [vmem:[%s429 + $0x20] sm:$0xf] %v1170
        %1235 = vst [vmem:[%s429 + $0x24] sm:$0xf] %v1171
        %1236 = vst [vmem:[%s429 + $0x28] sm:$0xf] %v1172
        %1237 = vst [vmem:[%s429 + $0x2c] sm:$0xf] %v1173
        %1238 = vst [vmem:[%s429 + $0x30] sm:$0xf] %v1174
        %1239 = vst [vmem:[%s429 + $0x34] sm:$0xf] %v1175
        %1240 = vst [vmem:[%s429 + $0x38] sm:$0xf] %v1176
        %1241 = vst [vmem:[%s429 + $0x3c] sm:$0xf] %v1177
        %1242 = vst [vmem:[%s429 + $0x40] sm:$0xf] %v1178
        %1243 = vst [vmem:[%s429 + $0x44] sm:$0xf] %v1179
        %1244 = vst [vmem:[%s429 + $0x48] sm:$0xf] %v1180
        %1245 = vst [vmem:[%s429 + $0x4c] sm:$0xf] %v1181
        %1246 = vst [vmem:[%s429 + $0x50] sm:$0xf] %v1182
        %1247 = vst [vmem:[%s429 + $0x54] sm:$0xf] %v1183
        %1248 = vst [vmem:[%s429 + $0x58] sm:$0xf] %v1184
        %1249 = vst [vmem:[%s429 + $0x5c] sm:$0xf] %v1185
        %1250 = vst [vmem:[%s429 + $0x60] sm:$0xf] %v1186
        %1251 = vst [vmem:[%s429 + $0x64] sm:$0xf] %v1187
        %1252 = vst [vmem:[%s429 + $0x68] sm:$0xf] %v1188
        %1253 = vst [vmem:[%s429 + $0x6c] sm:$0xf] %v1189
        %1254 = vst [vmem:[%s429 + $0x70] sm:$0xf] %v1190
        %1255 = vst [vmem:[%s429 + $0x74] sm:$0xf] %v1191
        %1256 = vst [vmem:[%s429 + $0x78] sm:$0xf] %v1192
        %1257 = vst [vmem:[%s429 + $0x7c] sm:$0xf] %v1193
        %s1258 = sand.u32 %s239, 1
        %s1259 = scalar_lea.sflag [#allocation5], %s1258
        %s1260 = sand.u32 %s239, 1
        %s1261 = smul.addr %s1260, 128
        %s1262 = scalar_lea.vmem [#allocation11], %s1261
        // Predicated region
        $region69: #{tpu_custom_call.1} parent=47 // pred_check
          %p1263 = pneg %p249
        $region70: #{tpu_custom_call.1} parent=47 // pred_check_branch
          %1265 = sbr.rel (%p1263) target = $region72
        $region71: #{tpu_custom_call.1} parent=47 // pred_region
          %s1266 = smul.u32 16, %s35
          %s1267 = smul.u32 2, %s36
          %s1269 = ssub.s32 2048, 2048
          %1270 = vsyncadd %s1259, %s1269
          %s1271 = sadd.s32 %s37, %s1267
          %s1272 = smul.addr %s1266, 2
          %s1273 = sadd.s32 %s1271, %s1272
          %s1274 = smul.addr %s34, 32
          %s1275 = sadd.s32 %s1273, %s1274
          %s1276 = smul.addr %s1275, 64
          %s1277 = scalar_lea.hbm %s7, %s1276
          %s1278 = sshll.u32 %s1262, 4
          %s1279 = int_to_ptr.vmem [resolvable:$true] %s1278
          %1284 = dma.vmem_to_hbm [thread:$0]  %s1279, 2048, %s1277, %s1259, 64, 64, 4
        $region72: #{tpu_custom_call.1} parent=47 // pred_fallthru
          _
      $region48: #{tpu_custom_call.1} parent=5 // pred_fallthru
        _
      %p1285 = scmp.le.s32.totalorder 2, %s23
      // Predicated region
      $region73: #{tpu_custom_call.1} parent=5 // pred_check
        %p1286 = pneg %p1285
      $region74: #{tpu_custom_call.1} parent=5 // pred_check_branch
        %1288 = sbr.rel (%p1286) target = $region76
      $region75: #{tpu_custom_call.1} parent=5 // pred_region
        %s1289 = ssub.s32 %s23, 2
        // Predicated region
        $region77: #{tpu_custom_call.1} parent=75 // pred_check
          %p1290 = pneg %p255
        $region78: #{tpu_custom_call.1} parent=75 // pred_check_branch
          %1292 = sbr.rel (%p1290) target = $region80
        $region79: #{tpu_custom_call.1} parent=75 // pred_region
          %s1293 = sand.u32 %s240, 1
          %s1294 = scalar_lea.sflag [#allocation5], %s1293
          %s1295 = sand.u32 %s240, 1
          %s1296 = smul.addr %s1295, 128
          %s1297 = scalar_lea.vmem [#allocation11], %s1296
          %1298 = dma.done %s1294, 2048
        $region80: #{tpu_custom_call.1} parent=75 // pred_fallthru
          _
      $region76: #{tpu_custom_call.1} parent=5 // pred_fallthru
        _
    $region6: #{tpu_custom_call.1} parent=1 // loop_footer
      %s27 = sadd.s32 1, %s23
    $region7: #{tpu_custom_call.1} parent=1 // loop_footer_branch
      %22 = sbr.rel target = $region3
    $region8: #{tpu_custom_call.1} parent=1 // loop_exit
      _
    %1299 = vsyncpa [#allocation4], 1
    %s1300 = scalar_lea.sflag [#allocation4], 1
    %1301 = vsyncpa %s1300, 1
    %1302 = vsyncpa [#allocation7], 1
    %s1303 = scalar_lea.sflag [#allocation7], 1
    %1304 = vsyncpa %s1303, 1
    %1305 = vsyncpa [#allocation10], 1
    %1306 = vsyncpa [#allocation5], 1
    %s1307 = scalar_lea.sflag [#allocation5], 1
    %1308 = vsyncpa %s1307, 1

</llo_original>
